<compile_context>
chip_gen: v7x
topology: tpu7x:2x2x1
jax: 0.10.0
libtpu: 0.0.40
codegen_flags: <defaults>
</compile_context>

<pallas_src>
import functools

import jax
import jax.numpy as jnp
from jax import lax
from jax.experimental import pallas as pl
from jax.experimental.pallas import tpu as pltpu


# --------------------------------------------------------------------------
# Pass 1: fused theta / phi / g projection (once per position, not per (q,k))
# --------------------------------------------------------------------------
def _project_kernel(x_ref, w_ref, b_ref, th_ref, ph_t_ref, g_ref, *,
                    ci_p, mxu_dtype):
    """x_ref (1,C,TN) f32; w_ref (Ci_tot,C) bf16; b_ref (Ci_tot,1) f32."""
    x_t = x_ref[0].astype(mxu_dtype)                                   # (C, TN)
    proj = jnp.dot(w_ref[...], x_t,
                   preferred_element_type=jnp.float32) + b_ref[...]    # (Ci_tot, TN)
    th_ref[0] = proj[:ci_p].astype(th_ref.dtype)                       # (Ci_p, TN)
    # Transpose phi once here (amortized over all query tiles) so the score
    # matmul in the attention kernel is fully canonical.
    ph_t_ref[0] = jnp.transpose(proj[ci_p:2 * ci_p]).astype(ph_t_ref.dtype)
    g_ref[0] = proj[2 * ci_p:].astype(g_ref.dtype)                     # (Ci_g, TN)


# --------------------------------------------------------------------------
# Pass 2: flash-style attention + folded W/BN projection + residual
# --------------------------------------------------------------------------
def _attention_kernel(x_ref, th_ref, ph_ref, g_ref, ww_ref, bw_ref, o_ref,
                      m_sc, acc_sc, *, tk, n_real, masked, mxu_dtype):
    """Blocks: x (1,C,TQ) f32, theta (1,Ci_p,TQ) bf16, phi_t (1,TK,Ci_p) bf16,
    g_aug (1,Ci_g,TK) bf16, ww (C,Ci_g) bf16, bw (C,1) f32, out (1,C,TQ)."""
    k = pl.program_id(2)
    nk = pl.num_programs(2)

    @pl.when(k == 0)
    def _init():
        m_sc[...] = jnp.full_like(m_sc, -jnp.inf)
        acc_sc[...] = jnp.zeros_like(acc_sc)

    # Scores (TK, TQ): canonical (M,K)x(K,N) — phi arrives pre-transposed.
    s = jnp.dot(ph_ref[0], th_ref[0], preferred_element_type=jnp.float32)

    if masked:  # static: only emitted when N was padded up to a multiple of 128
        kpos = lax.broadcasted_iota(jnp.int32, (tk, 1), 0) + k * tk
        s = jnp.where(kpos < n_real, s, -jnp.inf)

    # Online softmax over the key (sublane) axis.
    m_prev = m_sc[...]                                                  # (1, TQ)
    m_new = jnp.maximum(m_prev, jnp.max(s, axis=0, keepdims=True))
    alpha = jnp.exp(m_prev - m_new)
    p = jnp.exp(s - m_new)                                              # (TK, TQ) f32
    # g_aug row 0 is all-ones, so acc row 0 accumulates the softmax denominator
    # on the MXU (no explicit cross-sublane jnp.sum per key tile).
    acc_sc[...] = alpha * acc_sc[...] + jnp.dot(
        g_ref[0], p.astype(mxu_dtype), preferred_element_type=jnp.float32)
    m_sc[...] = m_new

    @pl.when(k == nk - 1)
    def _finalize():
        acc = acc_sc[...]                                               # (Ci_g, TQ)
        inv_l = pl.reciprocal(acc[0:1, :], approx=False)                # exact, 1x per q-tile
        y = (acc * inv_l).astype(mxu_dtype)
        # Folded W projection (eval-mode BatchNorm baked into ww/bw) + residual.
        wy = jnp.dot(ww_ref[...], y,
                     preferred_element_type=jnp.float32) + bw_ref[...]  # (C, TQ)
        o_ref[0] = (wy + x_ref[0]).astype(o_ref.dtype)


# --------------------------------------------------------------------------
# Tile / VMEM heuristics
# --------------------------------------------------------------------------
def _round_up(n, m):
    return ((n + m - 1) // m) * m


def _vmem_capacity_bytes():
    try:
        info = pltpu.get_tpu_info()
        cap = getattr(info, "vmem_capacity_bytes", None)
        if cap:
            return int(cap)
    except Exception:
        pass
    return 64 * 1024 * 1024  # conservative (v7x per-core VMEM)


def _attn_vmem_bytes(c, ci_p, ci_g, tq, tk):
    f32, bf16 = 4, 2
    q_side = 2 * 2 * c * tq * f32              # x_q in + out, double-buffered
    q_side += 2 * ci_p * tq * bf16             # theta block, double-buffered
    k_side = 2 * (tk * ci_p + ci_g * tk) * bf16
    weights = 2 * (c * ci_g * bf16 + c * f32)
    scratch = ci_g * tq * f32 + tq * f32
    temps = 2 * tk * tq * f32                  # s and p tiles
    return q_side + k_side + weights + scratch + temps


# --------------------------------------------------------------------------
# Wrapper
# --------------------------------------------------------------------------
def nonlocal_block(x, params, *, eps=1e-5, mxu_dtype=jnp.bfloat16,
                   tq=None, tk=None, vmem_limit_bytes=None):
    """x: (B, C, T, H, W) float32, NCTHW like the PyTorch module."""
    B, C, T, H, W = x.shape
    N = T * H * W
    Ci = params["w_g"].shape[1]

    # Channel padding to sublane granularity (exact — padded rows are zero).
    Ci_p = _round_up(max(Ci, 1), 8)            # theta / phi rows
    Ci_g = _round_up(Ci + 1, 8)                # g rows + leading all-ones row
    Ci_tot = 2 * Ci_p + Ci_g

    # Position padding to a lane multiple; padded keys masked with -inf.
    N_pad = _round_up(N, 128)
    x_flat = x.reshape(B, C, N)
    if N_pad != N:
        x_flat = jnp.pad(x_flat, ((0, 0), (0, 0), (0, N_pad - N)))

    # --- Host-side parameter packing (bf16 weights, no per-step casts) -----
    def pad_rows(a, rows):
        return jnp.pad(a, ((0, rows - a.shape[0]), (0, 0)))

    def pad_vec(v, rows):
        return jnp.pad(v, (0, rows - v.shape[0]))

    w_theta_blk = pad_rows(params["w_theta"].T, Ci_p)                  # (Ci_p, C)
    w_phi_blk = pad_rows(params["w_phi"].T, Ci_p)                      # (Ci_p, C)
    w_gaug_blk = pad_rows(
        jnp.concatenate([jnp.zeros((1, C), jnp.float32), params["w_g"].T], axis=0),
        Ci_g)                                                          # (Ci_g, C)
    w_all = jnp.concatenate([w_theta_blk, w_phi_blk, w_gaug_blk],
                            axis=0).astype(mxu_dtype)                  # (Ci_tot, C)
    b_all = jnp.concatenate([
        pad_vec(params["b_theta"], Ci_p),
        pad_vec(params["b_phi"], Ci_p),
        pad_vec(jnp.concatenate([jnp.ones((1,), jnp.float32), params["b_g"]]), Ci_g),
    ]).reshape(Ci_tot, 1).astype(jnp.float32)

    # Fold eval-mode BatchNorm3d into the W projection (numerically identical).
    # TODO(synk): training-mode BatchNorm3d (batch statistics) and the
    # instance='dot' / sub_sample=True variants are not implemented (non-default).
    scale = params["bn_gamma"] * lax.rsqrt(params["bn_var"] + eps)     # (C,)
    w_W_f = params["w_W"] * scale[None, :]                             # (Ci, C)
    b_W_f = (params["b_W"] - params["bn_mean"]) * scale + params["bn_beta"]
    w_W_cols = pad_rows(
        jnp.concatenate([jnp.zeros((1, C), jnp.float32), w_W_f], axis=0), Ci_g)
    w_W_t = w_W_cols.T.astype(mxu_dtype)                               # (C, Ci_g)
    b_W_col = b_W_f.reshape(C, 1).astype(jnp.float32)

    # --- VMEM-aware tile selection ------------------------------------------
    cap = _vmem_capacity_bytes()
    if vmem_limit_bytes is None:
        vmem_limit_bytes = max(32 * 1024 * 1024,
                               min(int(cap * 0.7), 96 * 1024 * 1024))
    big_vmem = cap >= 100 * 1024 * 1024        # v5e / v6e (128 MiB) vs v7x (64 MiB)
    tk_prefs = (512, 256, 128) if big_vmem else (256, 128)
    tq_prefs = (2048, 1024, 512, 256, 128) if big_vmem else (1024, 512, 256, 128)

    TK = tk or next(t for t in tk_prefs if N_pad % t == 0)
    if tq is None:
        TQ = 128
        for t in tq_prefs:
            if N_pad % t == 0 and _attn_vmem_bytes(
                    C, Ci_p, Ci_g, t, TK) <= int(0.8 * vmem_limit_bytes):
                TQ = t
                break
    else:
        TQ = tq
    TN = TQ
    n_q, n_k = N_pad // TQ, N_pad // TK

    # --- Pass 1: fused projections -------------------------------------------
    theta_s, phi_t_s, g_s = pl.pallas_call(
        functools.partial(_project_kernel, ci_p=Ci_p, mxu_dtype=mxu_dtype),
        out_shape=(
            jax.ShapeDtypeStruct((B, Ci_p, N_pad), mxu_dtype),
            jax.ShapeDtypeStruct((B, N_pad, Ci_p), mxu_dtype),
            jax.ShapeDtypeStruct((B, Ci_g, N_pad), mxu_dtype),
        ),
        grid=(B, N_pad // TN),
        in_specs=[
            pl.BlockSpec((1, C, TN), lambda b, n: (b, 0, n)),
            pl.BlockSpec((Ci_tot, C), lambda b, n: (0, 0)),
            pl.BlockSpec((Ci_tot, 1), lambda b, n: (0, 0)),
        ],
        out_specs=(
            pl.BlockSpec((1, Ci_p, TN), lambda b, n: (b, 0, n)),
            pl.BlockSpec((1, TN, Ci_p), lambda b, n: (b, n, 0)),
            pl.BlockSpec((1, Ci_g, TN), lambda b, n: (b, 0, n)),
        ),
        compiler_params=pltpu.CompilerParams(
            dimension_semantics=("parallel", "parallel"),
            vmem_limit_bytes=vmem_limit_bytes,
        ),
    )(x_flat, w_all, b_all)

    # --- Pass 2: attention + W/BN + residual ----------------------------------
    out = pl.pallas_call(
        functools.partial(_attention_kernel, tk=TK, n_real=N,
                          masked=(N_pad != N), mxu_dtype=mxu_dtype),
        out_shape=jax.ShapeDtypeStruct((B, C, N_pad), x.dtype),
        grid=(B, n_q, n_k),
        in_specs=[
            pl.BlockSpec((1, C, TQ), lambda b, q, k: (b, 0, q)),       # x (residual)
            pl.BlockSpec((1, Ci_p, TQ), lambda b, q, k: (b, 0, q)),    # theta
            pl.BlockSpec((1, TK, Ci_p), lambda b, q, k: (b, k, 0)),    # phi (transposed)
            pl.BlockSpec((1, Ci_g, TK), lambda b, q, k: (b, 0, k)),    # g (+ ones row)
            pl.BlockSpec((C, Ci_g), lambda b, q, k: (0, 0)),           # W (BN folded)
            pl.BlockSpec((C, 1), lambda b, q, k: (0, 0)),              # W bias (folded)
        ],
        out_specs=pl.BlockSpec((1, C, TQ), lambda b, q, k: (b, 0, q)),
        scratch_shapes=[
            pltpu.VMEM((1, TQ), jnp.float32),      # running max m
            pltpu.VMEM((Ci_g, TQ), jnp.float32),   # accumulator (row 0 = softmax sum)
        ],
        compiler_params=pltpu.CompilerParams(
            dimension_semantics=("parallel", "parallel", "arbitrary"),
            vmem_limit_bytes=vmem_limit_bytes,
        ),
    )(x_flat, theta_s, phi_t_s, g_s, w_W_t, b_W_col)

    return out[:, :, :N].reshape(B, C, T, H, W)


# --------------------------------------------------------------------------
# Pure-JAX reference (un-folded BN, dense softmax) + parameter construction
# --------------------------------------------------------------------------
def reference(x, params, eps=1e-5):
    B, C, T, H, W = x.shape
    N = T * H * W
    xf = jnp.transpose(x.reshape(B, C, N), (0, 2, 1))                  # (B, N, C)
    g = xf @ params["w_g"] + params["b_g"]
    th = xf @ params["w_theta"] + params["b_theta"]
    ph = xf @ params["w_phi"] + params["b_phi"]
    f = jnp.einsum("bnc,bmc->bnm", th, ph)
    f = jax.nn.softmax(f, axis=-1)
    y = jnp.einsum("bnm,bmc->bnc", f, g)
    wy = y @ params["w_W"] + params["b_W"]
    bn = ((wy - params["bn_mean"]) / jnp.sqrt(params["bn_var"] + eps)
          * params["bn_gamma"] + params["bn_beta"])
    z = bn + xf
    return jnp.transpose(z, (0, 2, 1)).reshape(B, C, T, H, W)


def make_params(key, in_channels, inter_channels):
    ks = jax.random.split(key, 12)
    C, Ci = in_channels, inter_channels
    s = 0.2
    # NOTE: the PyTorch module initializes the BN affine to zero (so z == x at
    # init); nonzero values are used here so the full path is exercised.
    return {
        "w_g":     s * jax.random.normal(ks[0], (C, Ci), jnp.float32),
        "b_g":     s * jax.random.normal(ks[1], (Ci,), jnp.float32),
        "w_theta": s * jax.random.normal(ks[2], (C, Ci), jnp.float32),
        "b_theta": s * jax.random.normal(ks[3], (Ci,), jnp.float32),
        "w_phi":   s * jax.random.normal(ks[4], (C, Ci), jnp.float32),
        "b_phi":   s * jax.random.normal(ks[5], (Ci,), jnp.float32),
        "w_W":     s * jax.random.normal(ks[6], (Ci, C), jnp.float32),
        "b_W":     s * jax.random.normal(ks[7], (C,), jnp.float32),
        "bn_gamma": 1.0 + 0.1 * jax.random.normal(ks[8], (C,), jnp.float32),
        "bn_beta":  0.1 * jax.random.normal(ks[9], (C,), jnp.float32),
        "bn_mean":  0.1 * jax.random.normal(ks[10], (C,), jnp.float32),
        "bn_var":   1.0 + 0.1 * jnp.abs(jax.random.normal(ks[11], (C,), jnp.float32)),
    }


if __name__ == "__main__":
    key = jax.random.PRNGKey(0)
    k_x, k_p, k_x2, k_p2 = jax.random.split(key, 4)

    # Case 1: N = T*H*W = 1024 (lane-aligned, multi key-tile online softmax).
    B, C, T, H, W = 2, 16, 4, 16, 16
    Ci = C // 2
    x = jax.random.normal(k_x, (B, C, T, H, W), jnp.float32)
    params = make_params(k_p, C, Ci)
    z = jax.block_until_ready(nonlocal_block(x, params))
    z_ref = reference(x, params)
    assert z.shape == x.shape
    err = float(jnp.max(jnp.abs(z - z_ref)))
    assert jnp.allclose(z, z_ref, atol=2e-2, rtol=2e-2), err

    # Case 2: N = 300 (not a multiple of 128 -> key padding/masking path) and
    # Ci = 4 (channel padding to the sublane granularity).
    B2, C2, T2, H2, W2 = 1, 8, 3, 10, 10
    Ci2 = C2 // 2
    x2 = jax.random.normal(k_x2, (B2, C2, T2, H2, W2), jnp.float32)
    params2 = make_params(k_p2, C2, Ci2)
    z2 = jax.block_until_ready(nonlocal_block(x2, params2))
    z2_ref = reference(x2, params2)
    err2 = float(jnp.max(jnp.abs(z2 - z2_ref)))
    assert jnp.allclose(z2, z2_ref, atol=2e-2, rtol=2e-2), err2

    print("KERNEL_OK")
</pallas_src>

<mosaic_0001>
module attributes {stable_mosaic.version = 11 : i64} {
  func.func @_project_kernel(%arg0: i32, %arg1: i32, %arg2: memref<1x16x1024xf32, #tpu.memory_space<vmem>>, %arg3: memref<32x16xbf16, #tpu.memory_space<vmem>>, %arg4: memref<32x1xf32, #tpu.memory_space<vmem>>, %arg5: memref<1x8x1024xbf16, #tpu.memory_space<vmem>>, %arg6: memref<1x1024x8xbf16, #tpu.memory_space<vmem>>, %arg7: memref<1x16x1024xbf16, #tpu.memory_space<vmem>>) attributes {dimension_semantics = [#tpu.dimension_semantics<parallel>, #tpu.dimension_semantics<parallel>], iteration_bounds = array<i64: 2, 1>, scalar_prefetch = 0 : i64, scratch_operands = 0 : i64, tpu.core_type = #tpu.core_type<tc>, window_params = [{transform_indices = @transform_0, window_bounds = array<i64: 1, 16, 1024>}, {pipeline_mode = #tpu.pipeline_mode<synchronous>, transform_indices = @transform_1, window_bounds = array<i64: 32, 16>}, {pipeline_mode = #tpu.pipeline_mode<synchronous>, transform_indices = @transform_2, window_bounds = array<i64: 32, 1>}, {transform_indices = @transform_3, window_bounds = array<i64: 1, 8, 1024>}, {transform_indices = @transform_4, window_bounds = array<i64: 1, 1024, 8>}, {transform_indices = @transform_5, window_bounds = array<i64: 1, 16, 1024>}]} {
    %c0 = arith.constant 0 : index
    %c0_0 = arith.constant 0 : index
    %c0_1 = arith.constant 0 : index
    %0 = vector.load %arg2[%c0, %c0_0, %c0_1] : memref<1x16x1024xf32, #tpu.memory_space<vmem>>, vector<1x16x1024xf32>
    %1 = vector.shape_cast %0 : vector<1x16x1024xf32> to vector<16x1024xf32>
    %2 = arith.truncf %1 : vector<16x1024xf32> to vector<16x1024xbf16>
    %c0_2 = arith.constant 0 : index
    %c0_3 = arith.constant 0 : index
    %3 = vector.load %arg3[%c0_2, %c0_3] : memref<32x16xbf16, #tpu.memory_space<vmem>>, vector<32x16xbf16>
    %cst = arith.constant dense<0.000000e+00> : vector<32x1024xf32>
    %4 = tpu.matmul %3, %2, %cst {dimension_numbers = #tpu.dot_dimension_numbers<[1], [0], [0], [1], [0, 0, 1, 1], [], []>} : vector<32x16xbf16>, vector<16x1024xbf16>, vector<32x1024xf32> -> vector<32x1024xf32>
    %c0_4 = arith.constant 0 : index
    %c0_5 = arith.constant 0 : index
    %5 = vector.load %arg4[%c0_4, %c0_5] : memref<32x1xf32, #tpu.memory_space<vmem>>, vector<32x1xf32>
    %6 = vector.broadcast %5 : vector<32x1xf32> to vector<32x1024xf32>
    %7 = arith.addf %4, %6 : vector<32x1024xf32>
    %8 = vector.extract_strided_slice %7 {offsets = [0, 0], sizes = [8, 1024], strides = [1, 1]} : vector<32x1024xf32> to vector<8x1024xf32>
    %9 = arith.truncf %8 : vector<8x1024xf32> to vector<8x1024xbf16>
    %c0_6 = arith.constant 0 : index
    %c0_7 = arith.constant 0 : index
    %c0_8 = arith.constant 0 : index
    %10 = vector.load %arg5[%c0_6, %c0_7, %c0_8] : memref<1x8x1024xbf16, #tpu.memory_space<vmem>>, vector<1x8x1024xbf16>
    %11 = vector.shape_cast %10 : vector<1x8x1024xbf16> to vector<8x1024xbf16>
    %12 = vector.shape_cast %9 : vector<8x1024xbf16> to vector<1x8x1024xbf16>
    tpu.vector_store %arg5[%c0_6, %c0_7, %c0_8], %12 {strides = array<i32>} : memref<1x8x1024xbf16, #tpu.memory_space<vmem>>, vector<1x8x1024xbf16>,
    %13 = vector.extract_strided_slice %7 {offsets = [8, 0], sizes = [8, 1024], strides = [1, 1]} : vector<32x1024xf32> to vector<8x1024xf32>
    %14 = tpu.transpose %13, [1, 0] : vector<8x1024xf32> -> vector<1024x8xf32>
    %15 = arith.truncf %14 : vector<1024x8xf32> to vector<1024x8xbf16>
    %c0_9 = arith.constant 0 : index
    %c0_10 = arith.constant 0 : index
    %c0_11 = arith.constant 0 : index
    %16 = vector.load %arg6[%c0_9, %c0_10, %c0_11] : memref<1x1024x8xbf16, #tpu.memory_space<vmem>>, vector<1x1024x8xbf16>
    %17 = vector.shape_cast %16 : vector<1x1024x8xbf16> to vector<1024x8xbf16>
    %18 = vector.shape_cast %15 : vector<1024x8xbf16> to vector<1x1024x8xbf16>
    tpu.vector_store %arg6[%c0_9, %c0_10, %c0_11], %18 {strides = array<i32>} : memref<1x1024x8xbf16, #tpu.memory_space<vmem>>, vector<1x1024x8xbf16>,
    %19 = vector.extract_strided_slice %7 {offsets = [16, 0], sizes = [16, 1024], strides = [1, 1]} : vector<32x1024xf32> to vector<16x1024xf32>
    %20 = arith.truncf %19 : vector<16x1024xf32> to vector<16x1024xbf16>
    %c0_12 = arith.constant 0 : index
    %c0_13 = arith.constant 0 : index
    %c0_14 = arith.constant 0 : index
    %21 = vector.load %arg7[%c0_12, %c0_13, %c0_14] : memref<1x16x1024xbf16, #tpu.memory_space<vmem>>, vector<1x16x1024xbf16>
    %22 = vector.shape_cast %21 : vector<1x16x1024xbf16> to vector<16x1024xbf16>
    %23 = vector.shape_cast %20 : vector<16x1024xbf16> to vector<1x16x1024xbf16>
    tpu.vector_store %arg7[%c0_12, %c0_13, %c0_14], %23 {strides = array<i32>} : memref<1x16x1024xbf16, #tpu.memory_space<vmem>>, vector<1x16x1024xbf16>,
    return
  }
  func.func @transform_0(%arg0: i32, %arg1: i32) -> (i32, i32, i32) {
    %c0_i32 = arith.constant 0 : i32
    %c0_i32_0 = arith.constant 0 : i32
    return %arg0, %c0_i32, %arg1 : i32, i32, i32
  }
  func.func @transform_1(%arg0: i32, %arg1: i32) -> (i32, i32) {
    %c0_i32 = arith.constant 0 : i32
    %c0_i32_0 = arith.constant 0 : i32
    %c0_i32_1 = arith.constant 0 : i32
    return %c0_i32, %c0_i32_0 : i32, i32
  }
  func.func @transform_2(%arg0: i32, %arg1: i32) -> (i32, i32) {
    %c0_i32 = arith.constant 0 : i32
    %c0_i32_0 = arith.constant 0 : i32
    %c0_i32_1 = arith.constant 0 : i32
    return %c0_i32, %c0_i32_0 : i32, i32
  }
  func.func @transform_3(%arg0: i32, %arg1: i32) -> (i32, i32, i32) {
    %c0_i32 = arith.constant 0 : i32
    %c0_i32_0 = arith.constant 0 : i32
    return %arg0, %c0_i32, %arg1 : i32, i32, i32
  }
  func.func @transform_4(%arg0: i32, %arg1: i32) -> (i32, i32, i32) {
    %c0_i32 = arith.constant 0 : i32
    %c0_i32_0 = arith.constant 0 : i32
    return %arg0, %arg1, %c0_i32 : i32, i32, i32
  }
  func.func @transform_5(%arg0: i32, %arg1: i32) -> (i32, i32, i32) {
    %c0_i32 = arith.constant 0 : i32
    %c0_i32_0 = arith.constant 0 : i32
    return %arg0, %c0_i32, %arg1 : i32, i32, i32
  }
}

</mosaic_0001>

<llo_original>
// kernel: tpu_custom_call.1
$region0: #{tpu_custom_call.1}
  #allocation0 [shape = 'u32[]', space=smem, size = 0x4, offset = 0x4, fixed_abs, tag = 'smem constant byte address 0x4 - core index']
  #allocation1 [shape = 'u32[144,128]{1,0:T(1,128)}', space=vmem, size = 0x12000, scoped, tag = 'internal scratch']
  %s0 = inlined_call_operand.hbm [shape: f32[2,16,1024], index: 0, kind: input, shape index: {}]
  %s1 = inlined_call_operand.vmem [shape: bf16[32,16], index: 1, kind: input, shape index: {}]
  %s2 = inlined_call_operand.vmem [shape: f32[32,1], index: 2, kind: input, shape index: {}]
  %s3 = inlined_call_operand.hbm [shape: bf16[2,8,1024], index: 3, kind: output, shape index: {0}]
  %s4 = inlined_call_operand.vmem [shape: bf16[2,1024,8], index: 4, kind: output, shape index: {1}]
  %s5 = inlined_call_operand.hbm [shape: bf16[2,16,1024], index: 5, kind: output, shape index: {2}]
  %6 = xla_tuple %s3, %s4, %s5
  %s7 = sld [smem:[#allocation0]]
  $region65: #{tpu_custom_call.1} parent=0
    _
  %s9 = ssub.s32 1, %s7
  %s10 = scalar_select 0, %s9, %s7
  $region1: #{tpu_custom_call.1} parent=0
    #allocation2 [shape = 'u8[131072]{0}', space=vmem, size = 0x20000, scoped, tag = 'input window, operand 0']
    #allocation3 [shape = 's32[2]{0}', space=sflag, size = 0x8, scoped, tag = 'scoped memory for tpu_custom_call.1']
    #allocation4 [shape = 's32[2]{0}', space=sflag, size = 0x8, scoped, tag = 'scoped memory for tpu_custom_call.1']
    #allocation5 [shape = 'u8[32768]{0}', space=vmem, size = 0x8000, scoped, tag = 'output window, operand 0']
    #allocation6 [shape = 'u8[65536]{0}', space=vmem, size = 0x10000, scoped, tag = 'output window, operand 2']
    #allocation7 [shape = 's32[2]{0}', space=sflag, size = 0x8, scoped, tag = 'scoped memory for tpu_custom_call.1']
    %11 = vsyncpa [#allocation3], 0
    %s12 = scalar_lea.sflag [#allocation3], 1
    %13 = vsyncpa %s12, 0
    %14 = vsyncpa [#allocation4], 0
    %s15 = scalar_lea.sflag [#allocation4], 1
    %16 = vsyncpa %s15, 0
    %17 = vsyncpa [#allocation7], 0
    %s18 = scalar_lea.sflag [#allocation7], 1
    %19 = vsyncpa %s18, 0
    loop: start=0, step=1, limit=4
    $region2: #{tpu_custom_call.1} parent=1 // loop_pre_header
      _
    $region3: #{tpu_custom_call.1} parent=1 // loop_header
      %s21 = sphi 0, %s25
      %p22 = scmp.ge.s32.totalorder %s21, 4
      %s28 = sphi 0, %s40
      %s29 = sphi 0, %s36
      %s30 = sphi 0, %s28
      %s31 = sphi 0, %s29
      %s32 = sphi 0, %s30
      %s33 = sphi 0, %s31
      %s45 = sphi 0, %s47
      %s48 = sphi 0, %s45
      %s49 = sphi 0, %s48
      %s65 = sphi 0, %s49
      %s69 = sphi 0, %s69
      %s71 = sphi 0, %s69
      %s72 = sphi 0, %s71
      %s86 = sphi 0, %s72
      %s90 = sphi 0, %s90
      %s92 = sphi 0, %s90
      %s93 = sphi 0, %s92
      %s107 = sphi 0, %s93
      %s115 = sphi 0, %s117
      %s118 = sphi 0, %s115
      %s119 = sphi 0, %s118
      %s135 = sphi 0, %s119
      %s143 = sphi 0, %s145
      %s146 = sphi 0, %s143
      %s147 = sphi 0, %s146
      %s163 = sphi 0, %s147
      %s171 = sphi 0, %s173
      %s174 = sphi 0, %s171
      %s175 = sphi 0, %s174
      %s191 = sphi 0, %s175
    $region4: #{tpu_custom_call.1} parent=1 // loop_header_branch
      %24 = sbr.rel (%p22) target = $region8
    $region5: #{tpu_custom_call.1} parent=1 // loop_body
      %s26 = ssub.s32 %s21, 1
      %s27 = ssub.s32 %s21, 2
      %s34 = sadd.s32 1, %s29
      %p35 = scmp.ge.s32.totalorder %s34, 1
      %s36 = scalar_select %p35, 0, %s34
      %s37 = sadd.s32 1, %s28
      %s38 = scalar_select %p35, %s37, %s28
      %p39 = scmp.ge.s32.totalorder %s38, 2
      %s40 = scalar_select %p39, 0, %s38
      %s41 = ssub.s32 %s28, %s40
      %s42 = ssub.s32 %s29, %s36
      %s43 = sor.u32 %s41, %s42
      %p44 = scmp.eq.s32.totalorder %s43, 0
      %s46 = sadd.s32 %s45, 1
      %s47 = scalar_select %p44, %s45, %s46
      %p50 = pneg %p44
      %p51 = scmp.eq.s32.totalorder %s21, 1
      %p52 = por %p50, %p51
      %p53 = scmp.ne.s32.totalorder %s45, %s48
      %p54 = scmp.eq.s32.totalorder %s21, 0
      %p55 = por %p53, %p54
      %p56 = scmp.ne.s32.totalorder %s45, %s48
      %p57 = scmp.eq.s32.totalorder %s26, 1
      %p58 = por %p56, %p57
      %p59 = scmp.ne.s32.totalorder %s48, %s49
      %p60 = scmp.eq.s32.totalorder %s26, 0
      %p61 = por %p59, %p60
      %p62 = scmp.ne.s32.totalorder %s48, %s49
      %p63 = scmp.eq.s32.totalorder %s27, 1
      %p64 = por %p62, %p63
      %p66 = scmp.ne.s32.totalorder %s49, %s65
      %p67 = scmp.eq.s32.totalorder %s27, 0
      %p68 = por %p66, %p67
      %s70 = sadd.s32 %s69, 1
      %p73 = scmp.eq.s32.totalorder %s21, 1
      %p74 = scmp.ne.s32.totalorder %s69, %s71
      %p75 = scmp.eq.s32.totalorder %s21, 0
      %p76 = por %p74, %p75
      %p77 = scmp.ne.s32.totalorder %s69, %s71
      %p78 = scmp.eq.s32.totalorder %s26, 1
      %p79 = por %p77, %p78
      %p80 = scmp.ne.s32.totalorder %s71, %s72
      %p81 = scmp.eq.s32.totalorder %s26, 0
      %p82 = por %p80, %p81
      %p83 = scmp.ne.s32.totalorder %s71, %s72
      %p84 = scmp.eq.s32.totalorder %s27, 1
      %p85 = por %p83, %p84
      %p87 = scmp.ne.s32.totalorder %s72, %s86
      %p88 = scmp.eq.s32.totalorder %s27, 0
      %p89 = por %p87, %p88
      %s91 = sadd.s32 %s90, 1
      %p94 = scmp.eq.s32.totalorder %s21, 1
      %p95 = scmp.ne.s32.totalorder %s90, %s92
      %p96 = scmp.eq.s32.totalorder %s21, 0
      %p97 = por %p95, %p96
      %p98 = scmp.ne.s32.totalorder %s90, %s92
      %p99 = scmp.eq.s32.totalorder %s26, 1
      %p100 = por %p98, %p99
      %p101 = scmp.ne.s32.totalorder %s92, %s93
      %p102 = scmp.eq.s32.totalorder %s26, 0
      %p103 = por %p101, %p102
      %p104 = scmp.ne.s32.totalorder %s92, %s93
      %p105 = scmp.eq.s32.totalorder %s27, 1
      %p106 = por %p104, %p105
      %p108 = scmp.ne.s32.totalorder %s93, %s107
      %p109 = scmp.eq.s32.totalorder %s27, 0
      %p110 = por %p108, %p109
      %s111 = ssub.s32 %s28, %s40
      %s112 = ssub.s32 %s29, %s36
      %s113 = sor.u32 %s111, %s112
      %p114 = scmp.eq.s32.totalorder %s113, 0
      %s116 = sadd.s32 %s115, 1
      %s117 = scalar_select %p114, %s115, %s116
      %p120 = pneg %p114
      %p121 = scmp.eq.s32.totalorder %s21, 1
      %p122 = por %p120, %p121
      %p123 = scmp.ne.s32.totalorder %s115, %s118
      %p124 = scmp.eq.s32.totalorder %s21, 0
      %p125 = por %p123, %p124
      %p126 = scmp.ne.s32.totalorder %s115, %s118
      %p127 = scmp.eq.s32.totalorder %s26, 1
      %p128 = por %p126, %p127
      %p129 = scmp.ne.s32.totalorder %s118, %s119
      %p130 = scmp.eq.s32.totalorder %s26, 0
      %p131 = por %p129, %p130
      %p132 = scmp.ne.s32.totalorder %s118, %s119
      %p133 = scmp.eq.s32.totalorder %s27, 1
      %p134 = por %p132, %p133
      %p136 = scmp.ne.s32.totalorder %s119, %s135
      %p137 = scmp.eq.s32.totalorder %s27, 0
      %p138 = por %p136, %p137
      %s139 = ssub.s32 %s28, %s40
      %s140 = ssub.s32 %s29, %s36
      %s141 = sor.u32 %s139, %s140
      %p142 = scmp.eq.s32.totalorder %s141, 0
      %s144 = sadd.s32 %s143, 1
      %s145 = scalar_select %p142, %s143, %s144
      %p148 = pneg %p142
      %p149 = scmp.eq.s32.totalorder %s21, 1
      %p150 = por %p148, %p149
      %p151 = scmp.ne.s32.totalorder %s143, %s146
      %p152 = scmp.eq.s32.totalorder %s21, 0
      %p153 = por %p151, %p152
      %p154 = scmp.ne.s32.totalorder %s143, %s146
      %p155 = scmp.eq.s32.totalorder %s26, 1
      %p156 = por %p154, %p155
      %p157 = scmp.ne.s32.totalorder %s146, %s147
      %p158 = scmp.eq.s32.totalorder %s26, 0
      %p159 = por %p157, %p158
      %p160 = scmp.ne.s32.totalorder %s146, %s147
      %p161 = scmp.eq.s32.totalorder %s27, 1
      %p162 = por %p160, %p161
      %p164 = scmp.ne.s32.totalorder %s147, %s163
      %p165 = scmp.eq.s32.totalorder %s27, 0
      %p166 = por %p164, %p165
      %s167 = ssub.s32 %s28, %s40
      %s168 = ssub.s32 %s29, %s36
      %s169 = sor.u32 %s167, %s168
      %p170 = scmp.eq.s32.totalorder %s169, 0
      %s172 = sadd.s32 %s171, 1
      %s173 = scalar_select %p170, %s171, %s172
      %p176 = pneg %p170
      %p177 = scmp.eq.s32.totalorder %s21, 1
      %p178 = por %p176, %p177
      %p179 = scmp.ne.s32.totalorder %s171, %s174
      %p180 = scmp.eq.s32.totalorder %s21, 0
      %p181 = por %p179, %p180
      %p182 = scmp.ne.s32.totalorder %s171, %s174
      %p183 = scmp.eq.s32.totalorder %s26, 1
      %p184 = por %p182, %p183
      %p185 = scmp.ne.s32.totalorder %s174, %s175
      %p186 = scmp.eq.s32.totalorder %s26, 0
      %p187 = por %p185, %p186
      %p188 = scmp.ne.s32.totalorder %s174, %s175
      %p189 = scmp.eq.s32.totalorder %s27, 1
      %p190 = por %p188, %p189
      %p192 = scmp.ne.s32.totalorder %s175, %s191
      %p193 = scmp.eq.s32.totalorder %s27, 0
      %p194 = por %p192, %p193
      %p195 = scmp.le.s32.totalorder 1, %s21
      %p196 = scmp.lt.s32.totalorder %s21, 3
      %p197 = pnand %p195, %p196
      %p198 = pneg %p197
      // Predicated region
      $region9: #{tpu_custom_call.1} parent=5 // pred_check
        _
      $region10: #{tpu_custom_call.1} parent=5 // pred_check_branch
        %200 = sbr.rel (%p197) target = $region12
      $region11: #{tpu_custom_call.1} parent=5 // pred_region
        %s201 = ssub.s32 %s21, 1
        // Predicated region
        $region13: #{tpu_custom_call.1} parent=11 // pred_check
          %p202 = pneg %p82
        $region14: #{tpu_custom_call.1} parent=11 // pred_check_branch
          %204 = sbr.rel (%p202) target = $region16
        $region15: #{tpu_custom_call.1} parent=11 // pred_region
          _
        $region16: #{tpu_custom_call.1} parent=11 // pred_fallthru
          _
        // Predicated region
        $region17: #{tpu_custom_call.1} parent=11 // pred_check
          %p205 = pneg %p103
        $region18: #{tpu_custom_call.1} parent=11 // pred_check_branch
          %207 = sbr.rel (%p205) target = $region20
        $region19: #{tpu_custom_call.1} parent=11 // pred_region
          _
        $region20: #{tpu_custom_call.1} parent=11 // pred_fallthru
          _
      $region12: #{tpu_custom_call.1} parent=5 // pred_fallthru
        _
      %p208 = scmp.lt.s32.totalorder %s21, 2
      // Predicated region
      $region21: #{tpu_custom_call.1} parent=5 // pred_check
        %p209 = pneg %p208
      $region22: #{tpu_custom_call.1} parent=5 // pred_check_branch
        %211 = sbr.rel (%p209) target = $region24
      $region23: #{tpu_custom_call.1} parent=5 // pred_region
        // Predicated region
        $region25: #{tpu_custom_call.1} parent=23 // pred_check
          %p212 = pneg %p55
        $region26: #{tpu_custom_call.1} parent=23 // pred_check_branch
          %214 = sbr.rel (%p212) target = $region28
        $region27: #{tpu_custom_call.1} parent=23 // pred_region
          %s215 = sand.u32 %s45, 1
          %s216 = scalar_lea.sflag [#allocation3], %s215
          %s217 = sand.u32 %s45, 1
          %s218 = smul.addr %s217, 128
          %s219 = scalar_lea.vmem [#allocation2], %s218
          %s220 = smul.u32 8, %s29
          %s222 = ssub.s32 2048, 2048
          %223 = vsyncadd %s216, %s222
          %s224 = smul.addr %s28, 16
          %s225 = sadd.s32 %s220, %s224
          %s226 = smul.addr %s225, 128
          %s227 = scalar_lea.hbm %s0, %s226
          %s228 = sshll.u32 %s219, 4
          %s229 = int_to_ptr.vmem [resolvable:$true] %s228
          %234 = dma.hbm_to_vmem [thread:$0]  %s227, 2048, %s229, %s216, 1024, 1024, 64
        $region28: #{tpu_custom_call.1} parent=23 // pred_fallthru
          _
      $region24: #{tpu_custom_call.1} parent=5 // pred_fallthru
        _
      %p235 = scmp.le.s32.totalorder 1, %s21
      %p236 = scmp.lt.s32.totalorder %s21, 3
      %p237 = pnand %p235, %p236
      %p238 = pneg %p237
      // Predicated region
      $region29: #{tpu_custom_call.1} parent=5 // pred_check
        _
      $region30: #{tpu_custom_call.1} parent=5 // pred_check_branch
        %240 = sbr.rel (%p237) target = $region32
      $region31: #{tpu_custom_call.1} parent=5 // pred_region
        %s241 = ssub.s32 %s21, 1
        %s242 = sand.u32 %s48, 1
        %s243 = scalar_lea.sflag [#allocation3], %s242
        %s244 = sand.u32 %s48, 1
        %s245 = smul.addr %s244, 128
        %s246 = scalar_lea.vmem [#allocation2], %s245
        // Predicated region
        $region33: #{tpu_custom_call.1} parent=31 // pred_check
          %p247 = pneg %p61
        $region34: #{tpu_custom_call.1} parent=31 // pred_check_branch
          %249 = sbr.rel (%p247) target = $region36
        $region35: #{tpu_custom_call.1} parent=31 // pred_region
          %250 = dma.done %s243, 2048
        $region36: #{tpu_custom_call.1} parent=31 // pred_fallthru
          _
        %s251 = sand.u32 %s48, 1
        %s252 = scalar_lea.sflag [#allocation3], %s251
        %s253 = sand.u32 %s48, 1
        %s254 = smul.addr %s253, 128
        %s255 = scalar_lea.vmem [#allocation2], %s254
        %p256 = pneg %p61
        %p257 = pneg %p58
        %p258 = pneg %p82
        %p259 = pneg %p79
        %p260 = pneg %p103
        %p261 = pneg %p100
        %p262 = pneg %p131
        %p263 = pneg %p128
        %s264 = sand.u32 %s118, 1
        %s265 = scalar_lea.sflag [#allocation4], %s264
        %s266 = sand.u32 %s118, 1
        %s267 = smul.addr %s266, 32
        %s268 = scalar_lea.vmem [#allocation5], %s267
        %p269 = pneg %p159
        %p270 = pneg %p156
        %s271 = smul.u32 128, %s31
        %p272 = scmp.lt.s32.totalorder %s30, 1
        %s273 = scalar_select %p272, %s30, 1
        %p274 = scmp.lt.s32.totalorder %s271, 127
        %s275 = scalar_select %p274, %s271, 127
        %s276 = smul.addr %s273, 128
        %s277 = sadd.s32 %s275, %s276
        %s278 = smul.addr %s277, 4
        %s279 = scalar_lea.vmem %s4, %s278
        %p280 = pneg %p187
        %p281 = pneg %p184
        %s282 = sand.u32 %s174, 1
        %s283 = scalar_lea.sflag [#allocation7], %s282
        %s284 = sand.u32 %s174, 1
        %s285 = smul.addr %s284, 64
        %s286 = scalar_lea.vmem [#allocation6], %s285
        %s287 = smul.u32 8, %s31
        %s288 = smul.u32 8, %s31
        %s289 = smul.u32 128, %s31
        %p290 = scmp.lt.s32.totalorder %s30, 1
        %s291 = scalar_select %p290, %s30, 1
        %p292 = scmp.lt.s32.totalorder %s289, 127
        %s293 = scalar_select %p292, %s289, 127
        %s294 = smul.addr %s291, 128
        %s295 = sadd.s32 %s293, %s294
        %s296 = smul.addr %s295, 4
        %s297 = scalar_lea.vmem %s4, %s296
        %s298 = smul.u32 128, %s31
        %s299 = smul.u32 8, %s31
        %v301 = vld [vmem:[%s246] sm:$0xff]
        %v302 = vld [vmem:[%s246 + $0x8] sm:$0xff]
        %v303 = vld [vmem:[%s246 + $0x10] sm:$0xff]
        %v304 = vld [vmem:[%s246 + $0x18] sm:$0xff]
        %v305 = vld [vmem:[%s246 + $0x20] sm:$0xff]
        %v306 = vld [vmem:[%s246 + $0x28] sm:$0xff]
        %v307 = vld [vmem:[%s246 + $0x30] sm:$0xff]
        %v308 = vld [vmem:[%s246 + $0x38] sm:$0xff]
        %v309 = vld [vmem:[%s246 + $0x40] sm:$0xff]
        %v310 = vld [vmem:[%s246 + $0x48] sm:$0xff]
        %v311 = vld [vmem:[%s246 + $0x50] sm:$0xff]
        %v312 = vld [vmem:[%s246 + $0x58] sm:$0xff]
        %v313 = vld [vmem:[%s246 + $0x60] sm:$0xff]
        %v314 = vld [vmem:[%s246 + $0x68] sm:$0xff]
        %v315 = vld [vmem:[%s246 + $0x70] sm:$0xff]
        %v316 = vld [vmem:[%s246 + $0x78] sm:$0xff]
        %v317 = vpack.c.bf16 %v309, %v301
        %v318 = vpack.c.bf16 %v310, %v302
        %v319 = vpack.c.bf16 %v311, %v303
        %v320 = vpack.c.bf16 %v312, %v304
        %v321 = vpack.c.bf16 %v313, %v305
        %v322 = vpack.c.bf16 %v314, %v306
        %v323 = vpack.c.bf16 %v315, %v307
        %v324 = vpack.c.bf16 %v316, %v308
        %v325 = vld [vmem:[%s1] sm:$0xf]
        %v326 = vld [vmem:[%s1 + $0x4] sm:$0xf]
        %v327 = vld [vmem:[%s1 + $0x8] sm:$0xf]
        %v328 = vld [vmem:[%s1 + $0xc] sm:$0xf]
        %v329 = vld [vmem:[%s2] sm:$0xff]
        %v330 = vld [vmem:[%s2 + $0x8] sm:$0xff]
        %v331 = vld [vmem:[%s2 + $0x10] sm:$0xff]
        %v332 = vld [vmem:[%s2 + $0x18] sm:$0xff]
        %334 = vset.pattern.permute.xlu0 0
        %335 = vperm.xlu0 %334, %v329
        %v336 = vpop.permute.xlu0 %335
        %339 = vset.pattern.permute.xlu0 0
        %340 = vperm.xlu0 %339, %v330
        %v341 = vpop.permute.xlu0 %340
        %344 = vset.pattern.permute.xlu0 0
        %345 = vperm.xlu0 %344, %v331
        %v346 = vpop.permute.xlu0 %345
        %349 = vset.pattern.permute.xlu0 0
        %350 = vperm.xlu0 %349, %v332
        %v351 = vpop.permute.xlu0 %350
        %v357 = vunpack.c.l.b16 %v325
        %v358 = vunpack.c.l.b16 %v326
        %v359 = vunpack.c.l.b16 %v327
        %v360 = vunpack.c.l.b16 %v328
        %v361 = vpack.c.b16 %v358, %v357
        %v362 = vpack.c.b16 %v360, %v359
        %vm363 = vcmask 130048
        %v365 = vsel %vm363, %v361, 0
        %v368 = vsel %vm363, %v362, 0
        %370 = vmatprep.subr.bf16.mxu0 %v318
        %371 = vmatpush1.bf16.msra.mxu0 %v317
        %372 = vmatprep.subr.bf16.mxu0 0
        %373 = vmatpush1.bf16.msra.mxu0 0
        %374 = vmatprep.subr.bf16.mxu0 0
        %375 = vmatpush1.bf16.msra.mxu0 0
        %376 = vmatprep.subr.bf16.mxu0 0
        %377 = vmatpush1.bf16.msra.mxu0 0
        %378 = vmatprep.subr.bf16.mxu0 0
        %379 = vmatpush1.bf16.msra.mxu0 0
        %380 = vmatprep.subr.bf16.mxu0 0
        %381 = vmatpush1.bf16.msra.mxu0 0
        %382 = vmatprep.subr.bf16.mxu0 0
        %383 = vmatpush1.bf16.msra.mxu0 0
        %384 = vmatprep.subr.bf16.mxu0 0
        %385 = vmatpush1.bf16.msra.mxu0 0
        %386 = vmatprep.subr.bf16.mxu0 0
        %387 = vmatpush1.bf16.msra.mxu0 0
        %388 = vmatprep.subr.bf16.mxu0 0
        %389 = vmatpush1.bf16.msra.mxu0 0
        %390 = vmatprep.subr.bf16.mxu0 0
        %391 = vmatpush1.bf16.msra.mxu0 0
        %392 = vmatprep.subr.bf16.mxu0 0
        %393 = vmatpush1.bf16.msra.mxu0 0
        %394 = vmatprep.subr.bf16.mxu0 0
        %395 = vmatpush1.bf16.msra.mxu0 0
        %396 = vmatprep.subr.bf16.mxu0 0
        %397 = vmatpush1.bf16.msra.mxu0 0
        %398 = vmatprep.subr.bf16.mxu0 0
        %399 = vmatpush1.bf16.msra.mxu0 0
        %400 = vmatprep.subr.bf16.mxu0 0
        %401 = vmatpush1.bf16.msra.mxu0 0
        %402 = vmatprep.mubr.bf16.mxu0 0
        %403 = vmatmul.mubr.bf16.gmra.mrb[0].mxu0 %v365
        %v404 = vpop.f32.mrb[0].mxu0
        %v405 = vadd.f32 %v336, %v404
        %v406 = vpop.f32.mrb[0].mxu0
        %v407 = vadd.f32 %v336, %v406
        %v408 = vpop.f32.mrb[0].mxu0
        %v409 = vadd.f32 %v341, %v408
        %v410 = vpop.f32.mrb[0].mxu0
        %v411 = vadd.f32 %v341, %v410
        %412 = vmatprep.mubr.bf16.mxu0 0
        %413 = vmatmul.mubr.bf16.gmra.mrb[0].mxu0 %v368
        %v414 = vpop.f32.mrb[0].mxu0
        %v415 = vadd.f32 %v346, %v414
        %v416 = vpop.f32.mrb[0].mxu0
        %v417 = vadd.f32 %v346, %v416
        %v418 = vpop.f32.mrb[0].mxu0
        %v419 = vadd.f32 %v351, %v418
        %v420 = vpop.f32.mrb[0].mxu0
        %v421 = vadd.f32 %v351, %v420
        %422 = vdwg.mxu0
        %423 = vmatprep.subr.bf16.mxu0 %v320
        %424 = vmatpush1.bf16.msra.mxu0 %v319
        %425 = vmatprep.subr.bf16.mxu0 0
        %426 = vmatpush1.bf16.msra.mxu0 0
        %427 = vmatprep.subr.bf16.mxu0 0
        %428 = vmatpush1.bf16.msra.mxu0 0
        %429 = vmatprep.subr.bf16.mxu0 0
        %430 = vmatpush1.bf16.msra.mxu0 0
        %431 = vmatprep.subr.bf16.mxu0 0
        %432 = vmatpush1.bf16.msra.mxu0 0
        %433 = vmatprep.subr.bf16.mxu0 0
        %434 = vmatpush1.bf16.msra.mxu0 0
        %435 = vmatprep.subr.bf16.mxu0 0
        %436 = vmatpush1.bf16.msra.mxu0 0
        %437 = vmatprep.subr.bf16.mxu0 0
        %438 = vmatpush1.bf16.msra.mxu0 0
        %439 = vmatprep.subr.bf16.mxu0 0
        %440 = vmatpush1.bf16.msra.mxu0 0
        %441 = vmatprep.subr.bf16.mxu0 0
        %442 = vmatpush1.bf16.msra.mxu0 0
        %443 = vmatprep.subr.bf16.mxu0 0
        %444 = vmatpush1.bf16.msra.mxu0 0
        %445 = vmatprep.subr.bf16.mxu0 0
        %446 = vmatpush1.bf16.msra.mxu0 0
        %447 = vmatprep.subr.bf16.mxu0 0
        %448 = vmatpush1.bf16.msra.mxu0 0
        %449 = vmatprep.subr.bf16.mxu0 0
        %450 = vmatpush1.bf16.msra.mxu0 0
        %451 = vmatprep.subr.bf16.mxu0 0
        %452 = vmatpush1.bf16.msra.mxu0 0
        %453 = vmatprep.subr.bf16.mxu0 0
        %454 = vmatpush1.bf16.msra.mxu0 0
        %455 = vmatprep.mubr.bf16.mxu0 0
        %456 = vmatmul.mubr.bf16.gmra.mrb[0].mxu0 %v365
        %v457 = vpop.f32.mrb[0].mxu0
        %v458 = vadd.f32 %v336, %v457
        %v459 = vpop.f32.mrb[0].mxu0
        %v460 = vadd.f32 %v336, %v459
        %v461 = vpop.f32.mrb[0].mxu0
        %v462 = vadd.f32 %v341, %v461
        %v463 = vpop.f32.mrb[0].mxu0
        %v464 = vadd.f32 %v341, %v463
        %465 = vmatprep.mubr.bf16.mxu0 0
        %466 = vmatmul.mubr.bf16.gmra.mrb[0].mxu0 %v368
        %v467 = vpop.f32.mrb[0].mxu0
        %v468 = vadd.f32 %v346, %v467
        %v469 = vpop.f32.mrb[0].mxu0
        %v470 = vadd.f32 %v346, %v469
        %v471 = vpop.f32.mrb[0].mxu0
        %v472 = vadd.f32 %v351, %v471
        %v473 = vpop.f32.mrb[0].mxu0
        %v474 = vadd.f32 %v351, %v473
        %475 = vdwg.mxu0
        %476 = vmatprep.subr.bf16.mxu0 %v322
        %477 = vmatpush1.bf16.msra.mxu0 %v321
        %478 = vmatprep.subr.bf16.mxu0 0
        %479 = vmatpush1.bf16.msra.mxu0 0
        %480 = vmatprep.subr.bf16.mxu0 0
        %481 = vmatpush1.bf16.msra.mxu0 0
        %482 = vmatprep.subr.bf16.mxu0 0
        %483 = vmatpush1.bf16.msra.mxu0 0
        %484 = vmatprep.subr.bf16.mxu0 0
        %485 = vmatpush1.bf16.msra.mxu0 0
        %486 = vmatprep.subr.bf16.mxu0 0
        %487 = vmatpush1.bf16.msra.mxu0 0
        %488 = vmatprep.subr.bf16.mxu0 0
        %489 = vmatpush1.bf16.msra.mxu0 0
        %490 = vmatprep.subr.bf16.mxu0 0
        %491 = vmatpush1.bf16.msra.mxu0 0
        %492 = vmatprep.subr.bf16.mxu0 0
        %493 = vmatpush1.bf16.msra.mxu0 0
        %494 = vmatprep.subr.bf16.mxu0 0
        %495 = vmatpush1.bf16.msra.mxu0 0
        %496 = vmatprep.subr.bf16.mxu0 0
        %497 = vmatpush1.bf16.msra.mxu0 0
        %498 = vmatprep.subr.bf16.mxu0 0
        %499 = vmatpush1.bf16.msra.mxu0 0
        %500 = vmatprep.subr.bf16.mxu0 0
        %501 = vmatpush1.bf16.msra.mxu0 0
        %502 = vmatprep.subr.bf16.mxu0 0
        %503 = vmatpush1.bf16.msra.mxu0 0
        %504 = vmatprep.subr.bf16.mxu0 0
        %505 = vmatpush1.bf16.msra.mxu0 0
        %506 = vmatprep.subr.bf16.mxu0 0
        %507 = vmatpush1.bf16.msra.mxu0 0
        %508 = vmatprep.mubr.bf16.mxu0 0
        %509 = vmatmul.mubr.bf16.gmra.mrb[0].mxu0 %v365
        %v510 = vpop.f32.mrb[0].mxu0
        %v511 = vadd.f32 %v336, %v510
        %v512 = vpop.f32.mrb[0].mxu0
        %v513 = vadd.f32 %v336, %v512
        %v514 = vpop.f32.mrb[0].mxu0
        %v515 = vadd.f32 %v341, %v514
        %v516 = vpop.f32.mrb[0].mxu0
        %v517 = vadd.f32 %v341, %v516
        %518 = vmatprep.mubr.bf16.mxu0 0
        %519 = vmatmul.mubr.bf16.gmra.mrb[0].mxu0 %v368
        %v520 = vpop.f32.mrb[0].mxu0
        %v521 = vadd.f32 %v346, %v520
        %v522 = vpop.f32.mrb[0].mxu0
        %v523 = vadd.f32 %v346, %v522
        %v524 = vpop.f32.mrb[0].mxu0
        %v525 = vadd.f32 %v351, %v524
        %v526 = vpop.f32.mrb[0].mxu0
        %v527 = vadd.f32 %v351, %v526
        %528 = vdwg.mxu0
        %529 = vmatprep.subr.bf16.mxu0 %v324
        %530 = vmatpush1.bf16.msra.mxu0 %v323
        %531 = vmatprep.subr.bf16.mxu0 0
        %532 = vmatpush1.bf16.msra.mxu0 0
        %533 = vmatprep.subr.bf16.mxu0 0
        %534 = vmatpush1.bf16.msra.mxu0 0
        %535 = vmatprep.subr.bf16.mxu0 0
        %536 = vmatpush1.bf16.msra.mxu0 0
        %537 = vmatprep.subr.bf16.mxu0 0
        %538 = vmatpush1.bf16.msra.mxu0 0
        %539 = vmatprep.subr.bf16.mxu0 0
        %540 = vmatpush1.bf16.msra.mxu0 0
        %541 = vmatprep.subr.bf16.mxu0 0
        %542 = vmatpush1.bf16.msra.mxu0 0
        %543 = vmatprep.subr.bf16.mxu0 0
        %544 = vmatpush1.bf16.msra.mxu0 0
        %545 = vmatprep.subr.bf16.mxu0 0
        %546 = vmatpush1.bf16.msra.mxu0 0
        %547 = vmatprep.subr.bf16.mxu0 0
        %548 = vmatpush1.bf16.msra.mxu0 0
        %549 = vmatprep.subr.bf16.mxu0 0
        %550 = vmatpush1.bf16.msra.mxu0 0
        %551 = vmatprep.subr.bf16.mxu0 0
        %552 = vmatpush1.bf16.msra.mxu0 0
        %553 = vmatprep.subr.bf16.mxu0 0
        %554 = vmatpush1.bf16.msra.mxu0 0
        %555 = vmatprep.subr.bf16.mxu0 0
        %556 = vmatpush1.bf16.msra.mxu0 0
        %557 = vmatprep.subr.bf16.mxu0 0
        %558 = vmatpush1.bf16.msra.mxu0 0
        %559 = vmatprep.subr.bf16.mxu0 0
        %560 = vmatpush1.bf16.msra.mxu0 0
        %561 = vmatprep.mubr.bf16.mxu0 0
        %562 = vmatmul.mubr.bf16.gmra.mrb[0].mxu0 %v365
        %v563 = vpop.f32.mrb[0].mxu0
        %v564 = vadd.f32 %v336, %v563
        %v565 = vpop.f32.mrb[0].mxu0
        %v566 = vadd.f32 %v336, %v565
        %v567 = vpop.f32.mrb[0].mxu0
        %v568 = vadd.f32 %v341, %v567
        %v569 = vpop.f32.mrb[0].mxu0
        %v570 = vadd.f32 %v341, %v569
        %571 = vmatprep.mubr.bf16.mxu0 0
        %572 = vmatmul.mubr.bf16.gmra.mrb[0].mxu0 %v368
        %v573 = vpop.f32.mrb[0].mxu0
        %v574 = vadd.f32 %v346, %v573
        %v575 = vpop.f32.mrb[0].mxu0
        %v576 = vadd.f32 %v346, %v575
        %v577 = vpop.f32.mrb[0].mxu0
        %v578 = vadd.f32 %v351, %v577
        %v579 = vpop.f32.mrb[0].mxu0
        %v580 = vadd.f32 %v351, %v579
        %581 = vdwg.mxu0
        %v582 = vpack.c.bf16 %v405, %v405
        %v583 = vpack.c.bf16 %v407, %v407
        %v584 = vpack.c.bf16 %v458, %v458
        %v585 = vpack.c.bf16 %v460, %v460
        %v586 = vpack.c.bf16 %v511, %v511
        %v587 = vpack.c.bf16 %v513, %v513
        %v588 = vpack.c.bf16 %v564, %v564
        %v589 = vpack.c.bf16 %v566, %v566
        %v598 = vunpack.c.l.b16 %v582
        %v599 = vunpack.c.l.b16 %v583
        %v600 = vunpack.c.l.b16 %v584
        %v601 = vunpack.c.l.b16 %v585
        %v602 = vunpack.c.l.b16 %v586
        %v603 = vunpack.c.l.b16 %v587
        %v604 = vunpack.c.l.b16 %v588
        %v605 = vunpack.c.l.b16 %v589
        %v606 = vpack.c.b16 %v599, %v598
        %v607 = vpack.c.b16 %v601, %v600
        %v608 = vpack.c.b16 %v603, %v602
        %v609 = vpack.c.b16 %v605, %v604
        %614 = vst [vmem:[%s268] sm:$0xff] %v606
        %615 = vst [vmem:[%s268 + $0x8] sm:$0xff] %v607
        %616 = vst [vmem:[%s268 + $0x10] sm:$0xff] %v608
        %617 = vst [vmem:[%s268 + $0x18] sm:$0xff] %v609
        %618 = vxpose.xlu0.b32.start [1/16] %v409, 128
        %619 = vxpose.xlu0.b32.cont [2/16] 0.0, 128
        %620 = vxpose.xlu0.b32.cont [3/16] 0.0, 128
        %621 = vxpose.xlu0.b32.cont [4/16] 0.0, 128
        %622 = vxpose.xlu0.b32.cont [5/16] 0.0, 128
        %623 = vxpose.xlu0.b32.cont [6/16] 0.0, 128
        %624 = vxpose.xlu0.b32.cont [7/16] 0.0, 128
        %625 = vxpose.xlu0.b32.cont [8/16] 0.0, 128
        %626 = vxpose.xlu0.b32.cont [9/16] 0.0, 128
        %627 = vxpose.xlu0.b32.cont [10/16] 0.0, 128
        %628 = vxpose.xlu0.b32.cont [11/16] 0.0, 128
        %629 = vxpose.xlu0.b32.cont [12/16] 0.0, 128
        %630 = vxpose.xlu0.b32.cont [13/16] 0.0, 128
        %631 = vxpose.xlu0.b32.cont [14/16] 0.0, 128
        %632 = vxpose.xlu0.b32.cont [15/16] 0.0, 128
        %633 = vxpose.xlu0.b32.end [16/16] 0.0, 128
        %v634 = vpop.trf.xlu0
        %v635 = vpop.trf.xlu0
        %v636 = vpop.trf.xlu0
        %v637 = vpop.trf.xlu0
        %v638 = vpop.trf.xlu0
        %v639 = vpop.trf.xlu0
        %v640 = vpop.trf.xlu0
        %v641 = vpop.trf.xlu0
        %v642 = vpop.trf.xlu0
        %v643 = vpop.trf.xlu0
        %v644 = vpop.trf.xlu0
        %v645 = vpop.trf.xlu0
        %v646 = vpop.trf.xlu0
        %v647 = vpop.trf.xlu0
        %v648 = vpop.trf.xlu0
        %v649 = vpop.trf.xlu0
        %650 = vxpose.xlu0.b32.start [1/16] %v411, 128
        %651 = vxpose.xlu0.b32.cont [2/16] 0.0, 128
        %652 = vxpose.xlu0.b32.cont [3/16] 0.0, 128
        %653 = vxpose.xlu0.b32.cont [4/16] 0.0, 128
        %654 = vxpose.xlu0.b32.cont [5/16] 0.0, 128
        %655 = vxpose.xlu0.b32.cont [6/16] 0.0, 128
        %656 = vxpose.xlu0.b32.cont [7/16] 0.0, 128
        %657 = vxpose.xlu0.b32.cont [8/16] 0.0, 128
        %658 = vxpose.xlu0.b32.cont [9/16] 0.0, 128
        %659 = vxpose.xlu0.b32.cont [10/16] 0.0, 128
        %660 = vxpose.xlu0.b32.cont [11/16] 0.0, 128
        %661 = vxpose.xlu0.b32.cont [12/16] 0.0, 128
        %662 = vxpose.xlu0.b32.cont [13/16] 0.0, 128
        %663 = vxpose.xlu0.b32.cont [14/16] 0.0, 128
        %664 = vxpose.xlu0.b32.cont [15/16] 0.0, 128
        %665 = vxpose.xlu0.b32.end [16/16] 0.0, 128
        %v666 = vpop.trf.xlu0
        %v667 = vpop.trf.xlu0
        %v668 = vpop.trf.xlu0
        %v669 = vpop.trf.xlu0
        %v670 = vpop.trf.xlu0
        %v671 = vpop.trf.xlu0
        %v672 = vpop.trf.xlu0
        %v673 = vpop.trf.xlu0
        %v674 = vpop.trf.xlu0
        %v675 = vpop.trf.xlu0
        %v676 = vpop.trf.xlu0
        %v677 = vpop.trf.xlu0
        %v678 = vpop.trf.xlu0
        %v679 = vpop.trf.xlu0
        %v680 = vpop.trf.xlu0
        %v681 = vpop.trf.xlu0
        %682 = vxpose.xlu0.b32.start [1/16] %v462, 128
        %683 = vxpose.xlu0.b32.cont [2/16] 0.0, 128
        %684 = vxpose.xlu0.b32.cont [3/16] 0.0, 128
        %685 = vxpose.xlu0.b32.cont [4/16] 0.0, 128
        %686 = vxpose.xlu0.b32.cont [5/16] 0.0, 128
        %687 = vxpose.xlu0.b32.cont [6/16] 0.0, 128
        %688 = vxpose.xlu0.b32.cont [7/16] 0.0, 128
        %689 = vxpose.xlu0.b32.cont [8/16] 0.0, 128
        %690 = vxpose.xlu0.b32.cont [9/16] 0.0, 128
        %691 = vxpose.xlu0.b32.cont [10/16] 0.0, 128
        %692 = vxpose.xlu0.b32.cont [11/16] 0.0, 128
        %693 = vxpose.xlu0.b32.cont [12/16] 0.0, 128
        %694 = vxpose.xlu0.b32.cont [13/16] 0.0, 128
        %695 = vxpose.xlu0.b32.cont [14/16] 0.0, 128
        %696 = vxpose.xlu0.b32.cont [15/16] 0.0, 128
        %697 = vxpose.xlu0.b32.end [16/16] 0.0, 128
        %v698 = vpop.trf.xlu0
        %v699 = vpop.trf.xlu0
        %v700 = vpop.trf.xlu0
        %v701 = vpop.trf.xlu0
        %v702 = vpop.trf.xlu0
        %v703 = vpop.trf.xlu0
        %v704 = vpop.trf.xlu0
        %v705 = vpop.trf.xlu0
        %v706 = vpop.trf.xlu0
        %v707 = vpop.trf.xlu0
        %v708 = vpop.trf.xlu0
        %v709 = vpop.trf.xlu0
        %v710 = vpop.trf.xlu0
        %v711 = vpop.trf.xlu0
        %v712 = vpop.trf.xlu0
        %v713 = vpop.trf.xlu0
        %714 = vxpose.xlu0.b32.start [1/16] %v464, 128
        %715 = vxpose.xlu0.b32.cont [2/16] 0.0, 128
        %716 = vxpose.xlu0.b32.cont [3/16] 0.0, 128
        %717 = vxpose.xlu0.b32.cont [4/16] 0.0, 128
        %718 = vxpose.xlu0.b32.cont [5/16] 0.0, 128
        %719 = vxpose.xlu0.b32.cont [6/16] 0.0, 128
        %720 = vxpose.xlu0.b32.cont [7/16] 0.0, 128
        %721 = vxpose.xlu0.b32.cont [8/16] 0.0, 128
        %722 = vxpose.xlu0.b32.cont [9/16] 0.0, 128
        %723 = vxpose.xlu0.b32.cont [10/16] 0.0, 128
        %724 = vxpose.xlu0.b32.cont [11/16] 0.0, 128
        %725 = vxpose.xlu0.b32.cont [12/16] 0.0, 128
        %726 = vxpose.xlu0.b32.cont [13/16] 0.0, 128
        %727 = vxpose.xlu0.b32.cont [14/16] 0.0, 128
        %728 = vxpose.xlu0.b32.cont [15/16] 0.0, 128
        %729 = vxpose.xlu0.b32.end [16/16] 0.0, 128
        %v730 = vpop.trf.xlu0
        %v731 = vpop.trf.xlu0
        %v732 = vpop.trf.xlu0
        %v733 = vpop.trf.xlu0
        %v734 = vpop.trf.xlu0
        %v735 = vpop.trf.xlu0
        %v736 = vpop.trf.xlu0
        %v737 = vpop.trf.xlu0
        %v738 = vpop.trf.xlu0
        %v739 = vpop.trf.xlu0
        %v740 = vpop.trf.xlu0
        %v741 = vpop.trf.xlu0
        %v742 = vpop.trf.xlu0
        %v743 = vpop.trf.xlu0
        %v744 = vpop.trf.xlu0
        %v745 = vpop.trf.xlu0
        %746 = vxpose.xlu0.b32.start [1/16] %v515, 128
        %747 = vxpose.xlu0.b32.cont [2/16] 0.0, 128
        %748 = vxpose.xlu0.b32.cont [3/16] 0.0, 128
        %749 = vxpose.xlu0.b32.cont [4/16] 0.0, 128
        %750 = vxpose.xlu0.b32.cont [5/16] 0.0, 128
        %751 = vxpose.xlu0.b32.cont [6/16] 0.0, 128
        %752 = vxpose.xlu0.b32.cont [7/16] 0.0, 128
        %753 = vxpose.xlu0.b32.cont [8/16] 0.0, 128
        %754 = vxpose.xlu0.b32.cont [9/16] 0.0, 128
        %755 = vxpose.xlu0.b32.cont [10/16] 0.0, 128
        %756 = vxpose.xlu0.b32.cont [11/16] 0.0, 128
        %757 = vxpose.xlu0.b32.cont [12/16] 0.0, 128
        %758 = vxpose.xlu0.b32.cont [13/16] 0.0, 128
        %759 = vxpose.xlu0.b32.cont [14/16] 0.0, 128
        %760 = vxpose.xlu0.b32.cont [15/16] 0.0, 128
        %761 = vxpose.xlu0.b32.end [16/16] 0.0, 128
        %v762 = vpop.trf.xlu0
        %v763 = vpop.trf.xlu0
        %v764 = vpop.trf.xlu0
        %v765 = vpop.trf.xlu0
        %v766 = vpop.trf.xlu0
        %v767 = vpop.trf.xlu0
        %v768 = vpop.trf.xlu0
        %v769 = vpop.trf.xlu0
        %v770 = vpop.trf.xlu0
        %v771 = vpop.trf.xlu0
        %v772 = vpop.trf.xlu0
        %v773 = vpop.trf.xlu0
        %v774 = vpop.trf.xlu0
        %v775 = vpop.trf.xlu0
        %v776 = vpop.trf.xlu0
        %v777 = vpop.trf.xlu0
        %778 = vxpose.xlu0.b32.start [1/16] %v517, 128
        %779 = vxpose.xlu0.b32.cont [2/16] 0.0, 128
        %780 = vxpose.xlu0.b32.cont [3/16] 0.0, 128
        %781 = vxpose.xlu0.b32.cont [4/16] 0.0, 128
        %782 = vxpose.xlu0.b32.cont [5/16] 0.0, 128
        %783 = vxpose.xlu0.b32.cont [6/16] 0.0, 128
        %784 = vxpose.xlu0.b32.cont [7/16] 0.0, 128
        %785 = vxpose.xlu0.b32.cont [8/16] 0.0, 128
        %786 = vxpose.xlu0.b32.cont [9/16] 0.0, 128
        %787 = vxpose.xlu0.b32.cont [10/16] 0.0, 128
        %788 = vxpose.xlu0.b32.cont [11/16] 0.0, 128
        %789 = vxpose.xlu0.b32.cont [12/16] 0.0, 128
        %790 = vxpose.xlu0.b32.cont [13/16] 0.0, 128
        %791 = vxpose.xlu0.b32.cont [14/16] 0.0, 128
        %792 = vxpose.xlu0.b32.cont [15/16] 0.0, 128
        %793 = vxpose.xlu0.b32.end [16/16] 0.0, 128
        %v794 = vpop.trf.xlu0
        %v795 = vpop.trf.xlu0
        %v796 = vpop.trf.xlu0
        %v797 = vpop.trf.xlu0
        %v798 = vpop.trf.xlu0
        %v799 = vpop.trf.xlu0
        %v800 = vpop.trf.xlu0
        %v801 = vpop.trf.xlu0
        %v802 = vpop.trf.xlu0
        %v803 = vpop.trf.xlu0
        %v804 = vpop.trf.xlu0
        %v805 = vpop.trf.xlu0
        %v806 = vpop.trf.xlu0
        %v807 = vpop.trf.xlu0
        %v808 = vpop.trf.xlu0
        %v809 = vpop.trf.xlu0
        %810 = vxpose.xlu0.b32.start [1/16] %v568, 128
        %811 = vxpose.xlu0.b32.cont [2/16] 0.0, 128
        %812 = vxpose.xlu0.b32.cont [3/16] 0.0, 128
        %813 = vxpose.xlu0.b32.cont [4/16] 0.0, 128
        %814 = vxpose.xlu0.b32.cont [5/16] 0.0, 128
        %815 = vxpose.xlu0.b32.cont [6/16] 0.0, 128
        %816 = vxpose.xlu0.b32.cont [7/16] 0.0, 128
        %817 = vxpose.xlu0.b32.cont [8/16] 0.0, 128
        %818 = vxpose.xlu0.b32.cont [9/16] 0.0, 128
        %819 = vxpose.xlu0.b32.cont [10/16] 0.0, 128
        %820 = vxpose.xlu0.b32.cont [11/16] 0.0, 128
        %821 = vxpose.xlu0.b32.cont [12/16] 0.0, 128
        %822 = vxpose.xlu0.b32.cont [13/16] 0.0, 128
        %823 = vxpose.xlu0.b32.cont [14/16] 0.0, 128
        %824 = vxpose.xlu0.b32.cont [15/16] 0.0, 128
        %825 = vxpose.xlu0.b32.end [16/16] 0.0, 128
        %v826 = vpop.trf.xlu0
        %v827 = vpop.trf.xlu0
        %v828 = vpop.trf.xlu0
        %v829 = vpop.trf.xlu0
        %v830 = vpop.trf.xlu0
        %v831 = vpop.trf.xlu0
        %v832 = vpop.trf.xlu0
        %v833 = vpop.trf.xlu0
        %v834 = vpop.trf.xlu0
        %v835 = vpop.trf.xlu0
        %v836 = vpop.trf.xlu0
        %v837 = vpop.trf.xlu0
        %v838 = vpop.trf.xlu0
        %v839 = vpop.trf.xlu0
        %v840 = vpop.trf.xlu0
        %v841 = vpop.trf.xlu0
        %842 = vxpose.xlu0.b32.start [1/16] %v570, 128
        %843 = vxpose.xlu0.b32.cont [2/16] 0.0, 128
        %844 = vxpose.xlu0.b32.cont [3/16] 0.0, 128
        %845 = vxpose.xlu0.b32.cont [4/16] 0.0, 128
        %846 = vxpose.xlu0.b32.cont [5/16] 0.0, 128
        %847 = vxpose.xlu0.b32.cont [6/16] 0.0, 128
        %848 = vxpose.xlu0.b32.cont [7/16] 0.0, 128
        %849 = vxpose.xlu0.b32.cont [8/16] 0.0, 128
        %850 = vxpose.xlu0.b32.cont [9/16] 0.0, 128
        %851 = vxpose.xlu0.b32.cont [10/16] 0.0, 128
        %852 = vxpose.xlu0.b32.cont [11/16] 0.0, 128
        %853 = vxpose.xlu0.b32.cont [12/16] 0.0, 128
        %854 = vxpose.xlu0.b32.cont [13/16] 0.0, 128
        %855 = vxpose.xlu0.b32.cont [14/16] 0.0, 128
        %856 = vxpose.xlu0.b32.cont [15/16] 0.0, 128
        %857 = vxpose.xlu0.b32.end [16/16] 0.0, 128
        %v858 = vpop.trf.xlu0
        %v859 = vpop.trf.xlu0
        %v860 = vpop.trf.xlu0
        %v861 = vpop.trf.xlu0
        %v862 = vpop.trf.xlu0
        %v863 = vpop.trf.xlu0
        %v864 = vpop.trf.xlu0
        %v865 = vpop.trf.xlu0
        %v866 = vpop.trf.xlu0
        %v867 = vpop.trf.xlu0
        %v868 = vpop.trf.xlu0
        %v869 = vpop.trf.xlu0
        %v870 = vpop.trf.xlu0
        %v871 = vpop.trf.xlu0
        %v872 = vpop.trf.xlu0
        %v873 = vpop.trf.xlu0
        %v874 = vpack.c.bf16 %v635, %v634
        %v875 = vpack.c.bf16 %v637, %v636
        %v876 = vpack.c.bf16 %v639, %v638
        %v877 = vpack.c.bf16 %v641, %v640
        %v878 = vpack.c.bf16 %v643, %v642
        %v879 = vpack.c.bf16 %v645, %v644
        %v880 = vpack.c.bf16 %v647, %v646
        %v881 = vpack.c.bf16 %v649, %v648
        %v882 = vpack.c.bf16 %v667, %v666
        %v883 = vpack.c.bf16 %v669, %v668
        %v884 = vpack.c.bf16 %v671, %v670
        %v885 = vpack.c.bf16 %v673, %v672
        %v886 = vpack.c.bf16 %v675, %v674
        %v887 = vpack.c.bf16 %v677, %v676
        %v888 = vpack.c.bf16 %v679, %v678
        %v889 = vpack.c.bf16 %v681, %v680
        %v890 = vpack.c.bf16 %v699, %v698
        %v891 = vpack.c.bf16 %v701, %v700
        %v892 = vpack.c.bf16 %v703, %v702
        %v893 = vpack.c.bf16 %v705, %v704
        %v894 = vpack.c.bf16 %v707, %v706
        %v895 = vpack.c.bf16 %v709, %v708
        %v896 = vpack.c.bf16 %v711, %v710
        %v897 = vpack.c.bf16 %v713, %v712
        %v898 = vpack.c.bf16 %v731, %v730
        %v899 = vpack.c.bf16 %v733, %v732
        %v900 = vpack.c.bf16 %v735, %v734
        %v901 = vpack.c.bf16 %v737, %v736
        %v902 = vpack.c.bf16 %v739, %v738
        %v903 = vpack.c.bf16 %v741, %v740
        %v904 = vpack.c.bf16 %v743, %v742
        %v905 = vpack.c.bf16 %v745, %v744
        %v906 = vpack.c.bf16 %v763, %v762
        %v907 = vpack.c.bf16 %v765, %v764
        %v908 = vpack.c.bf16 %v767, %v766
        %v909 = vpack.c.bf16 %v769, %v768
        %v910 = vpack.c.bf16 %v771, %v770
        %v911 = vpack.c.bf16 %v773, %v772
        %v912 = vpack.c.bf16 %v775, %v774
        %v913 = vpack.c.bf16 %v777, %v776
        %v914 = vpack.c.bf16 %v795, %v794
        %v915 = vpack.c.bf16 %v797, %v796
        %v916 = vpack.c.bf16 %v799, %v798
        %v917 = vpack.c.bf16 %v801, %v800
        %v918 = vpack.c.bf16 %v803, %v802
        %v919 = vpack.c.bf16 %v805, %v804
        %v920 = vpack.c.bf16 %v807, %v806
        %v921 = vpack.c.bf16 %v809, %v808
        %v922 = vpack.c.bf16 %v827, %v826
        %v923 = vpack.c.bf16 %v829, %v828
        %v924 = vpack.c.bf16 %v831, %v830
        %v925 = vpack.c.bf16 %v833, %v832
        %v926 = vpack.c.bf16 %v835, %v834
        %v927 = vpack.c.bf16 %v837, %v836
        %v928 = vpack.c.bf16 %v839, %v838
        %v929 = vpack.c.bf16 %v841, %v840
        %v930 = vpack.c.bf16 %v859, %v858
        %v931 = vpack.c.bf16 %v861, %v860
        %v932 = vpack.c.bf16 %v863, %v862
        %v933 = vpack.c.bf16 %v865, %v864
        %v934 = vpack.c.bf16 %v867, %v866
        %v935 = vpack.c.bf16 %v869, %v868
        %v936 = vpack.c.bf16 %v871, %v870
        %v937 = vpack.c.bf16 %v873, %v872
        %v1002 = vunpack.c.l.b16 %v874
        %v1003 = vunpack.c.h.b16 %v874
        %v1004 = vunpack.c.l.b16 %v875
        %v1005 = vunpack.c.h.b16 %v875
        %v1006 = vunpack.c.l.b16 %v876
        %v1007 = vunpack.c.h.b16 %v876
        %v1008 = vunpack.c.l.b16 %v877
        %v1009 = vunpack.c.h.b16 %v877
        %v1010 = vunpack.c.l.b16 %v878
        %v1011 = vunpack.c.h.b16 %v878
        %v1012 = vunpack.c.l.b16 %v879
        %v1013 = vunpack.c.h.b16 %v879
        %v1014 = vunpack.c.l.b16 %v880
        %v1015 = vunpack.c.h.b16 %v880
        %v1016 = vunpack.c.l.b16 %v881
        %v1017 = vunpack.c.h.b16 %v881
        %v1018 = vunpack.c.l.b16 %v882
        %v1019 = vunpack.c.h.b16 %v882
        %v1020 = vunpack.c.l.b16 %v883
        %v1021 = vunpack.c.h.b16 %v883
        %v1022 = vunpack.c.l.b16 %v884
        %v1023 = vunpack.c.h.b16 %v884
        %v1024 = vunpack.c.l.b16 %v885
        %v1025 = vunpack.c.h.b16 %v885
        %v1026 = vunpack.c.l.b16 %v886
        %v1027 = vunpack.c.h.b16 %v886
        %v1028 = vunpack.c.l.b16 %v887
        %v1029 = vunpack.c.h.b16 %v887
        %v1030 = vunpack.c.l.b16 %v888
        %v1031 = vunpack.c.h.b16 %v888
        %v1032 = vunpack.c.l.b16 %v889
        %v1033 = vunpack.c.h.b16 %v889
        %v1034 = vunpack.c.l.b16 %v890
        %v1035 = vunpack.c.h.b16 %v890
        %v1036 = vunpack.c.l.b16 %v891
        %v1037 = vunpack.c.h.b16 %v891
        %v1038 = vunpack.c.l.b16 %v892
        %v1039 = vunpack.c.h.b16 %v892
        %v1040 = vunpack.c.l.b16 %v893
        %v1041 = vunpack.c.h.b16 %v893
        %v1042 = vunpack.c.l.b16 %v894
        %v1043 = vunpack.c.h.b16 %v894
        %v1044 = vunpack.c.l.b16 %v895
        %v1045 = vunpack.c.h.b16 %v895
        %v1046 = vunpack.c.l.b16 %v896
        %v1047 = vunpack.c.h.b16 %v896
        %v1048 = vunpack.c.l.b16 %v897
        %v1049 = vunpack.c.h.b16 %v897
        %v1050 = vunpack.c.l.b16 %v898
        %v1051 = vunpack.c.h.b16 %v898
        %v1052 = vunpack.c.l.b16 %v899
        %v1053 = vunpack.c.h.b16 %v899
        %v1054 = vunpack.c.l.b16 %v900
        %v1055 = vunpack.c.h.b16 %v900
        %v1056 = vunpack.c.l.b16 %v901
        %v1057 = vunpack.c.h.b16 %v901
        %v1058 = vunpack.c.l.b16 %v902
        %v1059 = vunpack.c.h.b16 %v902
        %v1060 = vunpack.c.l.b16 %v903
        %v1061 = vunpack.c.h.b16 %v903
        %v1062 = vunpack.c.l.b16 %v904
        %v1063 = vunpack.c.h.b16 %v904
        %v1064 = vunpack.c.l.b16 %v905
        %v1065 = vunpack.c.h.b16 %v905
        %v1066 = vunpack.c.l.b16 %v906
        %v1067 = vunpack.c.h.b16 %v906
        %v1068 = vunpack.c.l.b16 %v907
        %v1069 = vunpack.c.h.b16 %v907
        %v1070 = vunpack.c.l.b16 %v908
        %v1071 = vunpack.c.h.b16 %v908
        %v1072 = vunpack.c.l.b16 %v909
        %v1073 = vunpack.c.h.b16 %v909
        %v1074 = vunpack.c.l.b16 %v910
        %v1075 = vunpack.c.h.b16 %v910
        %v1076 = vunpack.c.l.b16 %v911
        %v1077 = vunpack.c.h.b16 %v911
        %v1078 = vunpack.c.l.b16 %v912
        %v1079 = vunpack.c.h.b16 %v912
        %v1080 = vunpack.c.l.b16 %v913
        %v1081 = vunpack.c.h.b16 %v913
        %v1082 = vunpack.c.l.b16 %v914
        %v1083 = vunpack.c.h.b16 %v914
        %v1084 = vunpack.c.l.b16 %v915
        %v1085 = vunpack.c.h.b16 %v915
        %v1086 = vunpack.c.l.b16 %v916
        %v1087 = vunpack.c.h.b16 %v916
        %v1088 = vunpack.c.l.b16 %v917
        %v1089 = vunpack.c.h.b16 %v917
        %v1090 = vunpack.c.l.b16 %v918
        %v1091 = vunpack.c.h.b16 %v918
        %v1092 = vunpack.c.l.b16 %v919
        %v1093 = vunpack.c.h.b16 %v919
        %v1094 = vunpack.c.l.b16 %v920
        %v1095 = vunpack.c.h.b16 %v920
        %v1096 = vunpack.c.l.b16 %v921
        %v1097 = vunpack.c.h.b16 %v921
        %v1098 = vunpack.c.l.b16 %v922
        %v1099 = vunpack.c.h.b16 %v922
        %v1100 = vunpack.c.l.b16 %v923
        %v1101 = vunpack.c.h.b16 %v923
        %v1102 = vunpack.c.l.b16 %v924
        %v1103 = vunpack.c.h.b16 %v924
        %v1104 = vunpack.c.l.b16 %v925
        %v1105 = vunpack.c.h.b16 %v925
        %v1106 = vunpack.c.l.b16 %v926
        %v1107 = vunpack.c.h.b16 %v926
        %v1108 = vunpack.c.l.b16 %v927
        %v1109 = vunpack.c.h.b16 %v927
        %v1110 = vunpack.c.l.b16 %v928
        %v1111 = vunpack.c.h.b16 %v928
        %v1112 = vunpack.c.l.b16 %v929
        %v1113 = vunpack.c.h.b16 %v929
        %v1114 = vunpack.c.l.b16 %v930
        %v1115 = vunpack.c.h.b16 %v930
        %v1116 = vunpack.c.l.b16 %v931
        %v1117 = vunpack.c.h.b16 %v931
        %v1118 = vunpack.c.l.b16 %v932
        %v1119 = vunpack.c.h.b16 %v932
        %v1120 = vunpack.c.l.b16 %v933
        %v1121 = vunpack.c.h.b16 %v933
        %v1122 = vunpack.c.l.b16 %v934
        %v1123 = vunpack.c.h.b16 %v934
        %v1124 = vunpack.c.l.b16 %v935
        %v1125 = vunpack.c.h.b16 %v935
        %v1126 = vunpack.c.l.b16 %v936
        %v1127 = vunpack.c.h.b16 %v936
        %v1128 = vunpack.c.l.b16 %v937
        %v1129 = vunpack.c.h.b16 %v937
        %v1130 = vpack.c.b16 %v1002, %v1002
        %v1131 = vpack.c.b16 %v1003, %v1003
        %v1132 = vpack.c.b16 %v1004, %v1004
        %v1133 = vpack.c.b16 %v1005, %v1005
        %v1134 = vpack.c.b16 %v1006, %v1006
        %v1135 = vpack.c.b16 %v1007, %v1007
        %v1136 = vpack.c.b16 %v1008, %v1008
        %v1137 = vpack.c.b16 %v1009, %v1009
        %v1138 = vpack.c.b16 %v1010, %v1010
        %v1139 = vpack.c.b16 %v1011, %v1011
        %v1140 = vpack.c.b16 %v1012, %v1012
        %v1141 = vpack.c.b16 %v1013, %v1013
        %v1142 = vpack.c.b16 %v1014, %v1014
        %v1143 = vpack.c.b16 %v1015, %v1015
        %v1144 = vpack.c.b16 %v1016, %v1016
        %v1145 = vpack.c.b16 %v1017, %v1017
        %v1146 = vpack.c.b16 %v1018, %v1018
        %v1147 = vpack.c.b16 %v1019, %v1019
        %v1148 = vpack.c.b16 %v1020, %v1020
        %v1149 = vpack.c.b16 %v1021, %v1021
        %v1150 = vpack.c.b16 %v1022, %v1022
        %v1151 = vpack.c.b16 %v1023, %v1023
        %v1152 = vpack.c.b16 %v1024, %v1024
        %v1153 = vpack.c.b16 %v1025, %v1025
        %v1154 = vpack.c.b16 %v1026, %v1026
        %v1155 = vpack.c.b16 %v1027, %v1027
        %v1156 = vpack.c.b16 %v1028, %v1028
        %v1157 = vpack.c.b16 %v1029, %v1029
        %v1158 = vpack.c.b16 %v1030, %v1030
        %v1159 = vpack.c.b16 %v1031, %v1031
        %v1160 = vpack.c.b16 %v1032, %v1032
        %v1161 = vpack.c.b16 %v1033, %v1033
        %v1162 = vpack.c.b16 %v1034, %v1034
        %v1163 = vpack.c.b16 %v1035, %v1035
        %v1164 = vpack.c.b16 %v1036, %v1036
        %v1165 = vpack.c.b16 %v1037, %v1037
        %v1166 = vpack.c.b16 %v1038, %v1038
        %v1167 = vpack.c.b16 %v1039, %v1039
        %v1168 = vpack.c.b16 %v1040, %v1040
        %v1169 = vpack.c.b16 %v1041, %v1041
        %v1170 = vpack.c.b16 %v1042, %v1042
        %v1171 = vpack.c.b16 %v1043, %v1043
        %v1172 = vpack.c.b16 %v1044, %v1044
        %v1173 = vpack.c.b16 %v1045, %v1045
        %v1174 = vpack.c.b16 %v1046, %v1046
        %v1175 = vpack.c.b16 %v1047, %v1047
        %v1176 = vpack.c.b16 %v1048, %v1048
        %v1177 = vpack.c.b16 %v1049, %v1049
        %v1178 = vpack.c.b16 %v1050, %v1050
        %v1179 = vpack.c.b16 %v1051, %v1051
        %v1180 = vpack.c.b16 %v1052, %v1052
        %v1181 = vpack.c.b16 %v1053, %v1053
        %v1182 = vpack.c.b16 %v1054, %v1054
        %v1183 = vpack.c.b16 %v1055, %v1055
        %v1184 = vpack.c.b16 %v1056, %v1056
        %v1185 = vpack.c.b16 %v1057, %v1057
        %v1186 = vpack.c.b16 %v1058, %v1058
        %v1187 = vpack.c.b16 %v1059, %v1059
        %v1188 = vpack.c.b16 %v1060, %v1060
        %v1189 = vpack.c.b16 %v1061, %v1061
        %v1190 = vpack.c.b16 %v1062, %v1062
        %v1191 = vpack.c.b16 %v1063, %v1063
        %v1192 = vpack.c.b16 %v1064, %v1064
        %v1193 = vpack.c.b16 %v1065, %v1065
        %v1194 = vpack.c.b16 %v1066, %v1066
        %v1195 = vpack.c.b16 %v1067, %v1067
        %v1196 = vpack.c.b16 %v1068, %v1068
        %v1197 = vpack.c.b16 %v1069, %v1069
        %v1198 = vpack.c.b16 %v1070, %v1070
        %v1199 = vpack.c.b16 %v1071, %v1071
        %v1200 = vpack.c.b16 %v1072, %v1072
        %v1201 = vpack.c.b16 %v1073, %v1073
        %v1202 = vpack.c.b16 %v1074, %v1074
        %v1203 = vpack.c.b16 %v1075, %v1075
        %v1204 = vpack.c.b16 %v1076, %v1076
        %v1205 = vpack.c.b16 %v1077, %v1077
        %v1206 = vpack.c.b16 %v1078, %v1078
        %v1207 = vpack.c.b16 %v1079, %v1079
        %v1208 = vpack.c.b16 %v1080, %v1080
        %v1209 = vpack.c.b16 %v1081, %v1081
        %v1210 = vpack.c.b16 %v1082, %v1082
        %v1211 = vpack.c.b16 %v1083, %v1083
        %v1212 = vpack.c.b16 %v1084, %v1084
        %v1213 = vpack.c.b16 %v1085, %v1085
        %v1214 = vpack.c.b16 %v1086, %v1086
        %v1215 = vpack.c.b16 %v1087, %v1087
        %v1216 = vpack.c.b16 %v1088, %v1088
        %v1217 = vpack.c.b16 %v1089, %v1089
        %v1218 = vpack.c.b16 %v1090, %v1090
        %v1219 = vpack.c.b16 %v1091, %v1091
        %v1220 = vpack.c.b16 %v1092, %v1092
        %v1221 = vpack.c.b16 %v1093, %v1093
        %v1222 = vpack.c.b16 %v1094, %v1094
        %v1223 = vpack.c.b16 %v1095, %v1095
        %v1224 = vpack.c.b16 %v1096, %v1096
        %v1225 = vpack.c.b16 %v1097, %v1097
        %v1226 = vpack.c.b16 %v1098, %v1098
        %v1227 = vpack.c.b16 %v1099, %v1099
        %v1228 = vpack.c.b16 %v1100, %v1100
        %v1229 = vpack.c.b16 %v1101, %v1101
        %v1230 = vpack.c.b16 %v1102, %v1102
        %v1231 = vpack.c.b16 %v1103, %v1103
        %v1232 = vpack.c.b16 %v1104, %v1104
        %v1233 = vpack.c.b16 %v1105, %v1105
        %v1234 = vpack.c.b16 %v1106, %v1106
        %v1235 = vpack.c.b16 %v1107, %v1107
        %v1236 = vpack.c.b16 %v1108, %v1108
        %v1237 = vpack.c.b16 %v1109, %v1109
        %v1238 = vpack.c.b16 %v1110, %v1110
        %v1239 = vpack.c.b16 %v1111, %v1111
        %v1240 = vpack.c.b16 %v1112, %v1112
        %v1241 = vpack.c.b16 %v1113, %v1113
        %v1242 = vpack.c.b16 %v1114, %v1114
        %v1243 = vpack.c.b16 %v1115, %v1115
        %v1244 = vpack.c.b16 %v1116, %v1116
        %v1245 = vpack.c.b16 %v1117, %v1117
        %v1246 = vpack.c.b16 %v1118, %v1118
        %v1247 = vpack.c.b16 %v1119, %v1119
        %v1248 = vpack.c.b16 %v1120, %v1120
        %v1249 = vpack.c.b16 %v1121, %v1121
        %v1250 = vpack.c.b16 %v1122, %v1122
        %v1251 = vpack.c.b16 %v1123, %v1123
        %v1252 = vpack.c.b16 %v1124, %v1124
        %v1253 = vpack.c.b16 %v1125, %v1125
        %v1254 = vpack.c.b16 %v1126, %v1126
        %v1255 = vpack.c.b16 %v1127, %v1127
        %v1256 = vpack.c.b16 %v1128, %v1128
        %v1257 = vpack.c.b16 %v1129, %v1129
        %vm1386 = vcmask 60416
        %1387 = vst.msk [vmem:[%s297] sm:$0xf] %vm1386, %v1130
        %1388 = vst.msk [vmem:[%s297 + $0x4] sm:$0xf] %vm1386, %v1131
        %1389 = vst.msk [vmem:[%s297 + $0x8] sm:$0xf] %vm1386, %v1132
        %1390 = vst.msk [vmem:[%s297 + $0xc] sm:$0xf] %vm1386, %v1133
        %1391 = vst.msk [vmem:[%s297 + $0x10] sm:$0xf] %vm1386, %v1134
        %1392 = vst.msk [vmem:[%s297 + $0x14] sm:$0xf] %vm1386, %v1135
        %1393 = vst.msk [vmem:[%s297 + $0x18] sm:$0xf] %vm1386, %v1136
        %1394 = vst.msk [vmem:[%s297 + $0x1c] sm:$0xf] %vm1386, %v1137
        %1395 = vst.msk [vmem:[%s297 + $0x20] sm:$0xf] %vm1386, %v1138
        %1396 = vst.msk [vmem:[%s297 + $0x24] sm:$0xf] %vm1386, %v1139
        %1397 = vst.msk [vmem:[%s297 + $0x28] sm:$0xf] %vm1386, %v1140
        %1398 = vst.msk [vmem:[%s297 + $0x2c] sm:$0xf] %vm1386, %v1141
        %1399 = vst.msk [vmem:[%s297 + $0x30] sm:$0xf] %vm1386, %v1142
        %1400 = vst.msk [vmem:[%s297 + $0x34] sm:$0xf] %vm1386, %v1143
        %1401 = vst.msk [vmem:[%s297 + $0x38] sm:$0xf] %vm1386, %v1144
        %1402 = vst.msk [vmem:[%s297 + $0x3c] sm:$0xf] %vm1386, %v1145
        %1403 = vst.msk [vmem:[%s297 + $0x40] sm:$0xf] %vm1386, %v1146
        %1404 = vst.msk [vmem:[%s297 + $0x44] sm:$0xf] %vm1386, %v1147
        %1405 = vst.msk [vmem:[%s297 + $0x48] sm:$0xf] %vm1386, %v1148
        %1406 = vst.msk [vmem:[%s297 + $0x4c] sm:$0xf] %vm1386, %v1149
        %1407 = vst.msk [vmem:[%s297 + $0x50] sm:$0xf] %vm1386, %v1150
        %1408 = vst.msk [vmem:[%s297 + $0x54] sm:$0xf] %vm1386, %v1151
        %1409 = vst.msk [vmem:[%s297 + $0x58] sm:$0xf] %vm1386, %v1152
        %1410 = vst.msk [vmem:[%s297 + $0x5c] sm:$0xf] %vm1386, %v1153
        %1411 = vst.msk [vmem:[%s297 + $0x60] sm:$0xf] %vm1386, %v1154
        %1412 = vst.msk [vmem:[%s297 + $0x64] sm:$0xf] %vm1386, %v1155
        %1413 = vst.msk [vmem:[%s297 + $0x68] sm:$0xf] %vm1386, %v1156
        %1414 = vst.msk [vmem:[%s297 + $0x6c] sm:$0xf] %vm1386, %v1157
        %1415 = vst.msk [vmem:[%s297 + $0x70] sm:$0xf] %vm1386, %v1158
        %1416 = vst.msk [vmem:[%s297 + $0x74] sm:$0xf] %vm1386, %v1159
        %1417 = vst.msk [vmem:[%s297 + $0x78] sm:$0xf] %vm1386, %v1160
        %1418 = vst.msk [vmem:[%s297 + $0x7c] sm:$0xf] %vm1386, %v1161
        %1419 = vst.msk [vmem:[%s297 + $0x80] sm:$0xf] %vm1386, %v1162
        %1420 = vst.msk [vmem:[%s297 + $0x84] sm:$0xf] %vm1386, %v1163
        %1421 = vst.msk [vmem:[%s297 + $0x88] sm:$0xf] %vm1386, %v1164
        %1422 = vst.msk [vmem:[%s297 + $0x8c] sm:$0xf] %vm1386, %v1165
        %1423 = vst.msk [vmem:[%s297 + $0x90] sm:$0xf] %vm1386, %v1166
        %1424 = vst.msk [vmem:[%s297 + $0x94] sm:$0xf] %vm1386, %v1167
        %1425 = vst.msk [vmem:[%s297 + $0x98] sm:$0xf] %vm1386, %v1168
        %1426 = vst.msk [vmem:[%s297 + $0x9c] sm:$0xf] %vm1386, %v1169
        %1427 = vst.msk [vmem:[%s297 + $0xa0] sm:$0xf] %vm1386, %v1170
        %1428 = vst.msk [vmem:[%s297 + $0xa4] sm:$0xf] %vm1386, %v1171
        %1429 = vst.msk [vmem:[%s297 + $0xa8] sm:$0xf] %vm1386, %v1172
        %1430 = vst.msk [vmem:[%s297 + $0xac] sm:$0xf] %vm1386, %v1173
        %1431 = vst.msk [vmem:[%s297 + $0xb0] sm:$0xf] %vm1386, %v1174
        %1432 = vst.msk [vmem:[%s297 + $0xb4] sm:$0xf] %vm1386, %v1175
        %1433 = vst.msk [vmem:[%s297 + $0xb8] sm:$0xf] %vm1386, %v1176
        %1434 = vst.msk [vmem:[%s297 + $0xbc] sm:$0xf] %vm1386, %v1177
        %1435 = vst.msk [vmem:[%s297 + $0xc0] sm:$0xf] %vm1386, %v1178
        %1436 = vst.msk [vmem:[%s297 + $0xc4] sm:$0xf] %vm1386, %v1179
        %1437 = vst.msk [vmem:[%s297 + $0xc8] sm:$0xf] %vm1386, %v1180
        %1438 = vst.msk [vmem:[%s297 + $0xcc] sm:$0xf] %vm1386, %v1181
        %1439 = vst.msk [vmem:[%s297 + $0xd0] sm:$0xf] %vm1386, %v1182
        %1440 = vst.msk [vmem:[%s297 + $0xd4] sm:$0xf] %vm1386, %v1183
        %1441 = vst.msk [vmem:[%s297 + $0xd8] sm:$0xf] %vm1386, %v1184
        %1442 = vst.msk [vmem:[%s297 + $0xdc] sm:$0xf] %vm1386, %v1185
        %1443 = vst.msk [vmem:[%s297 + $0xe0] sm:$0xf] %vm1386, %v1186
        %1444 = vst.msk [vmem:[%s297 + $0xe4] sm:$0xf] %vm1386, %v1187
        %1445 = vst.msk [vmem:[%s297 + $0xe8] sm:$0xf] %vm1386, %v1188
        %1446 = vst.msk [vmem:[%s297 + $0xec] sm:$0xf] %vm1386, %v1189
        %1447 = vst.msk [vmem:[%s297 + $0xf0] sm:$0xf] %vm1386, %v1190
        %1448 = vst.msk [vmem:[%s297 + $0xf4] sm:$0xf] %vm1386, %v1191
        %1449 = vst.msk [vmem:[%s297 + $0xf8] sm:$0xf] %vm1386, %v1192
        %1450 = vst.msk [vmem:[%s297 + $0xfc] sm:$0xf] %vm1386, %v1193
        %1451 = vst.msk [vmem:[%s297 + $0x100] sm:$0xf] %vm1386, %v1194
        %1452 = vst.msk [vmem:[%s297 + $0x104] sm:$0xf] %vm1386, %v1195
        %1453 = vst.msk [vmem:[%s297 + $0x108] sm:$0xf] %vm1386, %v1196
        %1454 = vst.msk [vmem:[%s297 + $0x10c] sm:$0xf] %vm1386, %v1197
        %1455 = vst.msk [vmem:[%s297 + $0x110] sm:$0xf] %vm1386, %v1198
        %1456 = vst.msk [vmem:[%s297 + $0x114] sm:$0xf] %vm1386, %v1199
        %1457 = vst.msk [vmem:[%s297 + $0x118] sm:$0xf] %vm1386, %v1200
        %1458 = vst.msk [vmem:[%s297 + $0x11c] sm:$0xf] %vm1386, %v1201
        %1459 = vst.msk [vmem:[%s297 + $0x120] sm:$0xf] %vm1386, %v1202
        %1460 = vst.msk [vmem:[%s297 + $0x124] sm:$0xf] %vm1386, %v1203
        %1461 = vst.msk [vmem:[%s297 + $0x128] sm:$0xf] %vm1386, %v1204
        %1462 = vst.msk [vmem:[%s297 + $0x12c] sm:$0xf] %vm1386, %v1205
        %1463 = vst.msk [vmem:[%s297 + $0x130] sm:$0xf] %vm1386, %v1206
        %1464 = vst.msk [vmem:[%s297 + $0x134] sm:$0xf] %vm1386, %v1207
        %1465 = vst.msk [vmem:[%s297 + $0x138] sm:$0xf] %vm1386, %v1208
        %1466 = vst.msk [vmem:[%s297 + $0x13c] sm:$0xf] %vm1386, %v1209
        %1467 = vst.msk [vmem:[%s297 + $0x140] sm:$0xf] %vm1386, %v1210
        %1468 = vst.msk [vmem:[%s297 + $0x144] sm:$0xf] %vm1386, %v1211
        %1469 = vst.msk [vmem:[%s297 + $0x148] sm:$0xf] %vm1386, %v1212
        %1470 = vst.msk [vmem:[%s297 + $0x14c] sm:$0xf] %vm1386, %v1213
        %1471 = vst.msk [vmem:[%s297 + $0x150] sm:$0xf] %vm1386, %v1214
        %1472 = vst.msk [vmem:[%s297 + $0x154] sm:$0xf] %vm1386, %v1215
        %1473 = vst.msk [vmem:[%s297 + $0x158] sm:$0xf] %vm1386, %v1216
        %1474 = vst.msk [vmem:[%s297 + $0x15c] sm:$0xf] %vm1386, %v1217
        %1475 = vst.msk [vmem:[%s297 + $0x160] sm:$0xf] %vm1386, %v1218
        %1476 = vst.msk [vmem:[%s297 + $0x164] sm:$0xf] %vm1386, %v1219
        %1477 = vst.msk [vmem:[%s297 + $0x168] sm:$0xf] %vm1386, %v1220
        %1478 = vst.msk [vmem:[%s297 + $0x16c] sm:$0xf] %vm1386, %v1221
        %1479 = vst.msk [vmem:[%s297 + $0x170] sm:$0xf] %vm1386, %v1222
        %1480 = vst.msk [vmem:[%s297 + $0x174] sm:$0xf] %vm1386, %v1223
        %1481 = vst.msk [vmem:[%s297 + $0x178] sm:$0xf] %vm1386, %v1224
        %1482 = vst.msk [vmem:[%s297 + $0x17c] sm:$0xf] %vm1386, %v1225
        %1483 = vst.msk [vmem:[%s297 + $0x180] sm:$0xf] %vm1386, %v1226
        %1484 = vst.msk [vmem:[%s297 + $0x184] sm:$0xf] %vm1386, %v1227
        %1485 = vst.msk [vmem:[%s297 + $0x188] sm:$0xf] %vm1386, %v1228
        %1486 = vst.msk [vmem:[%s297 + $0x18c] sm:$0xf] %vm1386, %v1229
        %1487 = vst.msk [vmem:[%s297 + $0x190] sm:$0xf] %vm1386, %v1230
        %1488 = vst.msk [vmem:[%s297 + $0x194] sm:$0xf] %vm1386, %v1231
        %1489 = vst.msk [vmem:[%s297 + $0x198] sm:$0xf] %vm1386, %v1232
        %1490 = vst.msk [vmem:[%s297 + $0x19c] sm:$0xf] %vm1386, %v1233
        %1491 = vst.msk [vmem:[%s297 + $0x1a0] sm:$0xf] %vm1386, %v1234
        %1492 = vst.msk [vmem:[%s297 + $0x1a4] sm:$0xf] %vm1386, %v1235
        %1493 = vst.msk [vmem:[%s297 + $0x1a8] sm:$0xf] %vm1386, %v1236
        %1494 = vst.msk [vmem:[%s297 + $0x1ac] sm:$0xf] %vm1386, %v1237
        %1495 = vst.msk [vmem:[%s297 + $0x1b0] sm:$0xf] %vm1386, %v1238
        %1496 = vst.msk [vmem:[%s297 + $0x1b4] sm:$0xf] %vm1386, %v1239
        %1497 = vst.msk [vmem:[%s297 + $0x1b8] sm:$0xf] %vm1386, %v1240
        %1498 = vst.msk [vmem:[%s297 + $0x1bc] sm:$0xf] %vm1386, %v1241
        %1499 = vst.msk [vmem:[%s297 + $0x1c0] sm:$0xf] %vm1386, %v1242
        %1500 = vst.msk [vmem:[%s297 + $0x1c4] sm:$0xf] %vm1386, %v1243
        %1501 = vst.msk [vmem:[%s297 + $0x1c8] sm:$0xf] %vm1386, %v1244
        %1502 = vst.msk [vmem:[%s297 + $0x1cc] sm:$0xf] %vm1386, %v1245
        %1503 = vst.msk [vmem:[%s297 + $0x1d0] sm:$0xf] %vm1386, %v1246
        %1504 = vst.msk [vmem:[%s297 + $0x1d4] sm:$0xf] %vm1386, %v1247
        %1505 = vst.msk [vmem:[%s297 + $0x1d8] sm:$0xf] %vm1386, %v1248
        %1506 = vst.msk [vmem:[%s297 + $0x1dc] sm:$0xf] %vm1386, %v1249
        %1507 = vst.msk [vmem:[%s297 + $0x1e0] sm:$0xf] %vm1386, %v1250
        %1508 = vst.msk [vmem:[%s297 + $0x1e4] sm:$0xf] %vm1386, %v1251
        %1509 = vst.msk [vmem:[%s297 + $0x1e8] sm:$0xf] %vm1386, %v1252
        %1510 = vst.msk [vmem:[%s297 + $0x1ec] sm:$0xf] %vm1386, %v1253
        %1511 = vst.msk [vmem:[%s297 + $0x1f0] sm:$0xf] %vm1386, %v1254
        %1512 = vst.msk [vmem:[%s297 + $0x1f4] sm:$0xf] %vm1386, %v1255
        %1513 = vst.msk [vmem:[%s297 + $0x1f8] sm:$0xf] %vm1386, %v1256
        %1514 = vst.msk [vmem:[%s297 + $0x1fc] sm:$0xf] %vm1386, %v1257
        %v1515 = vpack.c.bf16 %v419, %v415
        %v1516 = vpack.c.bf16 %v421, %v417
        %v1517 = vpack.c.bf16 %v472, %v468
        %v1518 = vpack.c.bf16 %v474, %v470
        %v1519 = vpack.c.bf16 %v525, %v521
        %v1520 = vpack.c.bf16 %v527, %v523
        %v1521 = vpack.c.bf16 %v578, %v574
        %v1522 = vpack.c.bf16 %v580, %v576
        %v1531 = vunpack.c.l.b16 %v1515
        %v1532 = vunpack.c.l.b16 %v1516
        %v1533 = vunpack.c.l.b16 %v1517
        %v1534 = vunpack.c.l.b16 %v1518
        %v1535 = vunpack.c.l.b16 %v1519
        %v1536 = vunpack.c.l.b16 %v1520
        %v1537 = vunpack.c.l.b16 %v1521
        %v1538 = vunpack.c.l.b16 %v1522
        %v1539 = vunpack.c.h.b16 %v1515
        %v1540 = vunpack.c.h.b16 %v1516
        %v1541 = vunpack.c.h.b16 %v1517
        %v1542 = vunpack.c.h.b16 %v1518
        %v1543 = vunpack.c.h.b16 %v1519
        %v1544 = vunpack.c.h.b16 %v1520
        %v1545 = vunpack.c.h.b16 %v1521
        %v1546 = vunpack.c.h.b16 %v1522
        %v1547 = vpack.c.b16 %v1532, %v1531
        %v1548 = vpack.c.b16 %v1534, %v1533
        %v1549 = vpack.c.b16 %v1536, %v1535
        %v1550 = vpack.c.b16 %v1538, %v1537
        %v1551 = vpack.c.b16 %v1540, %v1539
        %v1552 = vpack.c.b16 %v1542, %v1541
        %v1553 = vpack.c.b16 %v1544, %v1543
        %v1554 = vpack.c.b16 %v1546, %v1545
        %1563 = vst [vmem:[%s286] sm:$0xff] %v1547
        %1564 = vst [vmem:[%s286 + $0x8] sm:$0xff] %v1548
        %1565 = vst [vmem:[%s286 + $0x10] sm:$0xff] %v1549
        %1566 = vst [vmem:[%s286 + $0x18] sm:$0xff] %v1550
        %1567 = vst [vmem:[%s286 + $0x20] sm:$0xff] %v1551
        %1568 = vst [vmem:[%s286 + $0x28] sm:$0xff] %v1552
        %1569 = vst [vmem:[%s286 + $0x30] sm:$0xff] %v1553
        %1570 = vst [vmem:[%s286 + $0x38] sm:$0xff] %v1554
        %s1571 = sand.u32 %s118, 1
        %s1572 = scalar_lea.sflag [#allocation4], %s1571
        %s1573 = sand.u32 %s118, 1
        %s1574 = smul.addr %s1573, 32
        %s1575 = scalar_lea.vmem [#allocation5], %s1574
        %s1576 = smul.u32 128, %s31
        %p1577 = scmp.lt.s32.totalorder %s30, 1
        %s1578 = scalar_select %p1577, %s30, 1
        %p1579 = scmp.lt.s32.totalorder %s1576, 127
        %s1580 = scalar_select %p1579, %s1576, 127
        %s1581 = smul.addr %s1578, 128
        %s1582 = sadd.s32 %s1580, %s1581
        %s1583 = smul.addr %s1582, 4
        %s1584 = scalar_lea.vmem %s4, %s1583
        %s1585 = sand.u32 %s174, 1
        %s1586 = scalar_lea.sflag [#allocation7], %s1585
        %s1587 = sand.u32 %s174, 1
        %s1588 = smul.addr %s1587, 64
        %s1589 = scalar_lea.vmem [#allocation6], %s1588
        // Predicated region
        $region37: #{tpu_custom_call.1} parent=31 // pred_check
          %p1590 = pneg %p128
        $region38: #{tpu_custom_call.1} parent=31 // pred_check_branch
          %1592 = sbr.rel (%p1590) target = $region40
        $region39: #{tpu_custom_call.1} parent=31 // pred_region
          %s1593 = smul.u32 8, %s31
          %s1595 = ssub.s32 512, 512
          %1596 = vsyncadd %s1572, %s1595
          %s1597 = smul.addr %s30, 8
          %s1598 = sadd.s32 %s1593, %s1597
          %s1599 = smul.addr %s1598, 64
          %s1600 = scalar_lea.hbm %s3, %s1599
          %s1602 = sshll.u32 %s1575, 4
          %s1603 = int_to_ptr.vmem [resolvable:$true] %s1602
          %1605 = dma.vmem_to_hbm [thread:$0]  %s1603, 512, %s1600, %s1572
        $region40: #{tpu_custom_call.1} parent=31 // pred_fallthru
          _
        // Predicated region
        $region41: #{tpu_custom_call.1} parent=31 // pred_check
          %p1606 = pneg %p156
        $region42: #{tpu_custom_call.1} parent=31 // pred_check_branch
          %1608 = sbr.rel (%p1606) target = $region44
        $region43: #{tpu_custom_call.1} parent=31 // pred_region
          %s1609 = smul.u32 128, %s31
        $region44: #{tpu_custom_call.1} parent=31 // pred_fallthru
          _
        // Predicated region
        $region45: #{tpu_custom_call.1} parent=31 // pred_check
          %p1610 = pneg %p184
        $region46: #{tpu_custom_call.1} parent=31 // pred_check_branch
          %1612 = sbr.rel (%p1610) target = $region48
        $region47: #{tpu_custom_call.1} parent=31 // pred_region
          %s1613 = smul.u32 8, %s31
          %s1615 = ssub.s32 1024, 1024
          %1616 = vsyncadd %s1586, %s1615
          %s1617 = smul.addr %s30, 16
          %s1618 = sadd.s32 %s1613, %s1617
          %s1619 = smul.addr %s1618, 64
          %s1620 = scalar_lea.hbm %s5, %s1619
          %s1621 = sshll.u32 %s1589, 4
          %s1622 = int_to_ptr.vmem [resolvable:$true] %s1621
          %1627 = dma.vmem_to_hbm [thread:$0]  %s1622, 1024, %s1620, %s1586, 512, 512, 32
        $region48: #{tpu_custom_call.1} parent=31 // pred_fallthru
          _
      $region32: #{tpu_custom_call.1} parent=5 // pred_fallthru
        _
      %p1628 = scmp.le.s32.totalorder 2, %s21
      // Predicated region
      $region49: #{tpu_custom_call.1} parent=5 // pred_check
        %p1629 = pneg %p1628
      $region50: #{tpu_custom_call.1} parent=5 // pred_check_branch
        %1631 = sbr.rel (%p1629) target = $region52
      $region51: #{tpu_custom_call.1} parent=5 // pred_region
        %s1632 = ssub.s32 %s21, 2
        // Predicated region
        $region53: #{tpu_custom_call.1} parent=51 // pred_check
          %p1633 = pneg %p134
        $region54: #{tpu_custom_call.1} parent=51 // pred_check_branch
          %1635 = sbr.rel (%p1633) target = $region56
        $region55: #{tpu_custom_call.1} parent=51 // pred_region
          %s1636 = sand.u32 %s119, 1
          %s1637 = scalar_lea.sflag [#allocation4], %s1636
          %s1638 = sand.u32 %s119, 1
          %s1639 = smul.addr %s1638, 32
          %s1640 = scalar_lea.vmem [#allocation5], %s1639
          %1641 = dma.done %s1637, 512
        $region56: #{tpu_custom_call.1} parent=51 // pred_fallthru
          _
        // Predicated region
        $region57: #{tpu_custom_call.1} parent=51 // pred_check
          %p1642 = pneg %p162
        $region58: #{tpu_custom_call.1} parent=51 // pred_check_branch
          %1644 = sbr.rel (%p1642) target = $region60
        $region59: #{tpu_custom_call.1} parent=51 // pred_region
          %s1645 = smul.u32 128, %s33
          %p1646 = scmp.lt.s32.totalorder %s32, 1
          %s1647 = scalar_select %p1646, %s32, 1
          %p1648 = scmp.lt.s32.totalorder %s1645, 127
          %s1649 = scalar_select %p1648, %s1645, 127
          %s1650 = smul.addr %s1647, 128
          %s1651 = sadd.s32 %s1649, %s1650
          %s1652 = smul.addr %s1651, 4
          %s1653 = scalar_lea.vmem %s4, %s1652
        $region60: #{tpu_custom_call.1} parent=51 // pred_fallthru
          _
        // Predicated region
        $region61: #{tpu_custom_call.1} parent=51 // pred_check
          %p1654 = pneg %p190
        $region62: #{tpu_custom_call.1} parent=51 // pred_check_branch
          %1656 = sbr.rel (%p1654) target = $region64
        $region63: #{tpu_custom_call.1} parent=51 // pred_region
          %s1657 = sand.u32 %s175, 1
          %s1658 = scalar_lea.sflag [#allocation7], %s1657
          %s1659 = sand.u32 %s175, 1
          %s1660 = smul.addr %s1659, 64
          %s1661 = scalar_lea.vmem [#allocation6], %s1660
          %1662 = dma.done %s1658, 1024
        $region64: #{tpu_custom_call.1} parent=51 // pred_fallthru
          _
      $region52: #{tpu_custom_call.1} parent=5 // pred_fallthru
        _
    $region6: #{tpu_custom_call.1} parent=1 // loop_footer
      %s25 = sadd.s32 1, %s21
    $region7: #{tpu_custom_call.1} parent=1 // loop_footer_branch
      %20 = sbr.rel target = $region3
    $region8: #{tpu_custom_call.1} parent=1 // loop_exit
      _
    %1663 = vsyncpa [#allocation3], 1
    %s1664 = scalar_lea.sflag [#allocation3], 1
    %1665 = vsyncpa %s1664, 1
    %1666 = vsyncpa [#allocation4], 1
    %s1667 = scalar_lea.sflag [#allocation4], 1
    %1668 = vsyncpa %s1667, 1
    %1669 = vsyncpa [#allocation7], 1
    %s1670 = scalar_lea.sflag [#allocation7], 1
    %1671 = vsyncpa %s1670, 1

</llo_original>
